<compile_context>
chip_gen: v7x
topology: tpu7x:2x2x1
jax: 0.10.0
libtpu: 0.0.40
codegen_flags: <defaults>
</compile_context>

<pallas_src>
import functools

import jax
import jax.numpy as jnp
from jax.experimental import pallas as pl
from jax.experimental.pallas import tpu as pltpu


_LEAKY_SLOPE = 0.01  # torch nn.LeakyReLU default negative_slope


def _leaky_relu(x):
    return jnp.where(x > 0, x, _LEAKY_SLOPE * x)


def _round_up(x, m):
    return ((x + m - 1) // m) * m


def _make_actor_kernel(n_layers):
    """Kernel for an n_layers MLP: LeakyReLU between layers, Tanh at the end."""

    def kernel(*refs):
        x_ref = refs[0]
        o_ref = refs[-1]
        wb = refs[1:-1]
        h = x_ref[...]
        for i in range(n_layers):
            w_ref = wb[2 * i]
            b_ref = wb[2 * i + 1]
            # MXU matmul in the weight dtype (bf16 default), f32 accumulation.
            h = jnp.dot(h.astype(w_ref.dtype), w_ref[...],
                        preferred_element_type=jnp.float32)
            h = h + b_ref[...]                      # biases are f32
            if i < n_layers - 1:
                h = _leaky_relu(h)
            else:
                h = jnp.tanh(h)
        o_ref[...] = h.astype(o_ref.dtype)

    return kernel


def prepare_actor_params(params, weight_dtype=jnp.bfloat16):
    """One-time parameter prep (hoisted out of the forward path).

    Weights are cast to `weight_dtype` (halves the dominant weight HBM stream
    and uses the native bf16 MXU path); biases stay f32 (tiny, better numerics,
    no per-step casts inside the kernel).
    """
    return [(w.astype(weight_dtype), b.astype(jnp.float32)) for w, b in params]


def actor_forward(state, prepared_params, *, tile_b=1024):
    """state: [B, state_size]; prepared_params: list of (W[in,out], b[1,out]).

    Returns [B, action_size] f32.  Use prepare_actor_params() once and reuse
    its result across forward calls.
    """
    B, state_size = state.shape
    action_size = prepared_params[-1][0].shape[1]
    n_layers = len(prepared_params)
    w_dtype = prepared_params[0][0].dtype

    # Cast the input once in the wrapper (no-op on the f32 path): layer-1 then
    # multiplies bf16 x bf16 directly and the input DMA/HBM read is halved.
    x = state.astype(w_dtype)

    # Batch tile: 256-aligned (MXU cadence), capped at half the aligned batch
    # so the "parallel" axis has >=2 steps whenever b_pad >= 512 (v7x 2-TC
    # sharding); tile_b (default 1024) bounds per-step VMEM for huge batches.
    b_aligned = _round_up(max(B, 1), 256)
    tb = max(256, min(_round_up(tile_b, 256),
                      _round_up(pl.cdiv(b_aligned, 2), 256)))
    b_pad = _round_up(B, tb)
    if b_pad != B:
        x = jnp.pad(x, ((0, b_pad - B), (0, 0)))
    grid = (b_pad // tb,)

    in_specs = [pl.BlockSpec((tb, state_size), lambda i: (i, 0))]
    flat = [x]
    for w, b in prepared_params:
        # Constant index_map => weights/biases stay VMEM-resident across steps.
        in_specs.append(pl.BlockSpec(w.shape, lambda i: (0, 0)))
        in_specs.append(pl.BlockSpec(b.shape, lambda i: (0, 0)))
        flat.extend([w, b])

    # Unpadded output columns: last block dim == full array dim (allowed by the
    # (8,128) rule); cuts output writeback by ~16x vs. a 128-wide padded slab.
    out_specs = pl.BlockSpec((tb, action_size), lambda i: (i, 0))
    out_shape = jax.ShapeDtypeStruct((b_pad, action_size), jnp.float32)

    # Advisory cost estimate for XLA's scheduler.
    dims = [state_size] + [w.shape[1] for w, _ in prepared_params]
    flops = 2 * b_pad * sum(dims[i] * dims[i + 1] for i in range(len(dims) - 1))
    weight_bytes = sum(int(w.size) * w.dtype.itemsize + int(b.size) * b.dtype.itemsize
                       for w, b in prepared_params)
    bytes_accessed = (int(x.size) * x.dtype.itemsize
                      + weight_bytes
                      + b_pad * action_size * 4)
    cost = pl.CostEstimate(flops=flops,
                           transcendentals=b_pad * action_size,
                           bytes_accessed=bytes_accessed)

    out = pl.pallas_call(
        _make_actor_kernel(n_layers),
        out_shape=out_shape,
        grid=grid,
        in_specs=in_specs,
        out_specs=out_specs,
        compiler_params=pltpu.CompilerParams(
            dimension_semantics=("parallel",)),
        cost_estimate=cost,
    )(*flat)

    # Only padded *rows* (if any) are trimmed; columns are already exact.
    return out[:B] if b_pad != B else out


def init_actor_params(key, state_size, action_size, fc_units=(128, 128, 128)):
    """Deterministic init mirroring the torch module's init ranges.

    Hidden-layer weights: uniform(-1/sqrt(out_features), +1/sqrt(out_features))
    (the torch code uses weight.size()[0] == out_features).
    Biases: torch default uniform(-1/sqrt(in_features), +1/sqrt(in_features)).
    Final layer weights: uniform(-3e-3, 3e-3).
    """
    dims = [state_size] + list(fc_units) + [action_size]
    params = []
    for i in range(len(dims) - 1):
        fan_in, fan_out = dims[i], dims[i + 1]
        key, kw, kb = jax.random.split(key, 3)
        if i < len(dims) - 2:
            w_lim = 1.0 / float(jnp.sqrt(jnp.float32(fan_out)))
        else:
            w_lim = 3e-3
        b_lim = 1.0 / float(jnp.sqrt(jnp.float32(fan_in)))
        w = jax.random.uniform(kw, (fan_in, fan_out), jnp.float32, -w_lim, w_lim)
        b = jax.random.uniform(kb, (1, fan_out), jnp.float32, -b_lim, b_lim)
        params.append((w, b))
    return params


def actor_reference(state, params):
    """Pure-JAX f32 reference for correctness check."""
    h = state
    for i, (w, b) in enumerate(params):
        h = h @ w + b
        if i < len(params) - 1:
            h = jnp.where(h > 0, h, _LEAKY_SLOPE * h)
        else:
            h = jnp.tanh(h)
    return h


if __name__ == "__main__":
    key = jax.random.PRNGKey(0)
    batch, state_size, action_size = 2, 16, 8

    key, k_state = jax.random.split(key)
    state = jax.random.normal(k_state, (batch, state_size), jnp.float32)
    params = init_actor_params(key, state_size, action_size)

    ref = actor_reference(state, params)

    # Default path: bf16 weights + bf16 input, f32 accumulation (loose tol).
    prepared_bf16 = prepare_actor_params(params, weight_dtype=jnp.bfloat16)
    out = jax.block_until_ready(actor_forward(state, prepared_bf16))
    assert out.shape == (batch, action_size)
    assert jnp.allclose(out, ref, atol=1e-2, rtol=1e-2)

    # Full-f32 path tracks the torch module's numerics tightly.
    # TODO(synk): for bit-level parity with torch, pass
    # precision=lax.Precision.HIGHEST to the in-kernel dots on the f32 path.
    prepared_f32 = prepare_actor_params(params, weight_dtype=jnp.float32)
    out_f32 = jax.block_until_ready(actor_forward(state, prepared_f32))
    assert out_f32.shape == (batch, action_size)
    assert jnp.allclose(out_f32, ref, atol=1e-4, rtol=1e-4)

    print("KERNEL_OK")
</pallas_src>

<mosaic_0001>
module attributes {stable_mosaic.version = 11 : i64} {
  func.func @kernel(%arg0: i32, %arg1: memref<256x16xbf16, #tpu.memory_space<vmem>>, %arg2: memref<16x128xbf16, #tpu.memory_space<vmem>>, %arg3: memref<1x128xf32, #tpu.memory_space<vmem>>, %arg4: memref<128x128xbf16, #tpu.memory_space<vmem>>, %arg5: memref<1x128xf32, #tpu.memory_space<vmem>>, %arg6: memref<128x128xbf16, #tpu.memory_space<vmem>>, %arg7: memref<1x128xf32, #tpu.memory_space<vmem>>, %arg8: memref<128x8xbf16, #tpu.memory_space<vmem>>, %arg9: memref<1x8xf32, #tpu.memory_space<vmem>>, %arg10: memref<256x8xf32, #tpu.memory_space<vmem>>) attributes {dimension_semantics = [#tpu.dimension_semantics<parallel>], iteration_bounds = array<i64: 1>, scalar_prefetch = 0 : i64, scratch_operands = 0 : i64, tpu.core_type = #tpu.core_type<tc>, window_params = [{transform_indices = @transform_0, window_bounds = array<i64: 256, 16>}, {pipeline_mode = #tpu.pipeline_mode<synchronous>, transform_indices = @transform_1, window_bounds = array<i64: 16, 128>}, {pipeline_mode = #tpu.pipeline_mode<synchronous>, transform_indices = @transform_2, window_bounds = array<i64: 1, 128>}, {pipeline_mode = #tpu.pipeline_mode<synchronous>, transform_indices = @transform_3, window_bounds = array<i64: 128, 128>}, {pipeline_mode = #tpu.pipeline_mode<synchronous>, transform_indices = @transform_4, window_bounds = array<i64: 1, 128>}, {pipeline_mode = #tpu.pipeline_mode<synchronous>, transform_indices = @transform_5, window_bounds = array<i64: 128, 128>}, {pipeline_mode = #tpu.pipeline_mode<synchronous>, transform_indices = @transform_6, window_bounds = array<i64: 1, 128>}, {pipeline_mode = #tpu.pipeline_mode<synchronous>, transform_indices = @transform_7, window_bounds = array<i64: 128, 8>}, {pipeline_mode = #tpu.pipeline_mode<synchronous>, transform_indices = @transform_8, window_bounds = array<i64: 1, 8>}, {transform_indices = @transform_9, window_bounds = array<i64: 256, 8>}]} {
    %c0 = arith.constant 0 : index
    %c0_0 = arith.constant 0 : index
    %0 = vector.load %arg1[%c0, %c0_0] : memref<256x16xbf16, #tpu.memory_space<vmem>>, vector<256x16xbf16>
    %c0_1 = arith.constant 0 : index
    %c0_2 = arith.constant 0 : index
    %1 = vector.load %arg2[%c0_1, %c0_2] : memref<16x128xbf16, #tpu.memory_space<vmem>>, vector<16x128xbf16>
    %cst = arith.constant dense<0.000000e+00> : vector<256x128xf32>
    %2 = tpu.matmul %0, %1, %cst {dimension_numbers = #tpu.dot_dimension_numbers<[1], [0], [0], [1], [0, 0, 1, 1], [], []>} : vector<256x16xbf16>, vector<16x128xbf16>, vector<256x128xf32> -> vector<256x128xf32>
    %c0_3 = arith.constant 0 : index
    %c0_4 = arith.constant 0 : index
    %3 = vector.load %arg3[%c0_3, %c0_4] : memref<1x128xf32, #tpu.memory_space<vmem>>, vector<1x128xf32>
    %4 = vector.broadcast %3 : vector<1x128xf32> to vector<256x128xf32>
    %5 = arith.addf %2, %4 : vector<256x128xf32>
    %cst_5 = arith.constant 0.000000e+00 : f32
    %6 = vector.broadcast %cst_5 : f32 to vector<256x128xf32>
    %7 = arith.cmpf ogt, %5, %6 : vector<256x128xf32>
    %cst_6 = arith.constant 0.00999999977 : f32
    %8 = vector.broadcast %cst_6 : f32 to vector<256x128xf32>
    %9 = arith.mulf %8, %5 : vector<256x128xf32>
    %10 = arith.select %7, %5, %9 : vector<256x128xi1>, vector<256x128xf32>
    %11 = arith.truncf %10 : vector<256x128xf32> to vector<256x128xbf16>
    %c0_7 = arith.constant 0 : index
    %c0_8 = arith.constant 0 : index
    %12 = vector.load %arg4[%c0_7, %c0_8] : memref<128x128xbf16, #tpu.memory_space<vmem>>, vector<128x128xbf16>
    %cst_9 = arith.constant dense<0.000000e+00> : vector<256x128xf32>
    %13 = tpu.matmul %11, %12, %cst_9 {dimension_numbers = #tpu.dot_dimension_numbers<[1], [0], [0], [1], [0, 0, 1, 1], [], []>} : vector<256x128xbf16>, vector<128x128xbf16>, vector<256x128xf32> -> vector<256x128xf32>
    %c0_10 = arith.constant 0 : index
    %c0_11 = arith.constant 0 : index
    %14 = vector.load %arg5[%c0_10, %c0_11] : memref<1x128xf32, #tpu.memory_space<vmem>>, vector<1x128xf32>
    %15 = vector.broadcast %14 : vector<1x128xf32> to vector<256x128xf32>
    %16 = arith.addf %13, %15 : vector<256x128xf32>
    %cst_12 = arith.constant 0.000000e+00 : f32
    %17 = vector.broadcast %cst_12 : f32 to vector<256x128xf32>
    %18 = arith.cmpf ogt, %16, %17 : vector<256x128xf32>
    %cst_13 = arith.constant 0.00999999977 : f32
    %19 = vector.broadcast %cst_13 : f32 to vector<256x128xf32>
    %20 = arith.mulf %19, %16 : vector<256x128xf32>
    %21 = arith.select %18, %16, %20 : vector<256x128xi1>, vector<256x128xf32>
    %22 = arith.truncf %21 : vector<256x128xf32> to vector<256x128xbf16>
    %c0_14 = arith.constant 0 : index
    %c0_15 = arith.constant 0 : index
    %23 = vector.load %arg6[%c0_14, %c0_15] : memref<128x128xbf16, #tpu.memory_space<vmem>>, vector<128x128xbf16>
    %cst_16 = arith.constant dense<0.000000e+00> : vector<256x128xf32>
    %24 = tpu.matmul %22, %23, %cst_16 {dimension_numbers = #tpu.dot_dimension_numbers<[1], [0], [0], [1], [0, 0, 1, 1], [], []>} : vector<256x128xbf16>, vector<128x128xbf16>, vector<256x128xf32> -> vector<256x128xf32>
    %c0_17 = arith.constant 0 : index
    %c0_18 = arith.constant 0 : index
    %25 = vector.load %arg7[%c0_17, %c0_18] : memref<1x128xf32, #tpu.memory_space<vmem>>, vector<1x128xf32>
    %26 = vector.broadcast %25 : vector<1x128xf32> to vector<256x128xf32>
    %27 = arith.addf %24, %26 : vector<256x128xf32>
    %cst_19 = arith.constant 0.000000e+00 : f32
    %28 = vector.broadcast %cst_19 : f32 to vector<256x128xf32>
    %29 = arith.cmpf ogt, %27, %28 : vector<256x128xf32>
    %cst_20 = arith.constant 0.00999999977 : f32
    %30 = vector.broadcast %cst_20 : f32 to vector<256x128xf32>
    %31 = arith.mulf %30, %27 : vector<256x128xf32>
    %32 = arith.select %29, %27, %31 : vector<256x128xi1>, vector<256x128xf32>
    %33 = arith.truncf %32 : vector<256x128xf32> to vector<256x128xbf16>
    %c0_21 = arith.constant 0 : index
    %c0_22 = arith.constant 0 : index
    %34 = vector.load %arg8[%c0_21, %c0_22] : memref<128x8xbf16, #tpu.memory_space<vmem>>, vector<128x8xbf16>
    %cst_23 = arith.constant dense<0.000000e+00> : vector<256x8xf32>
    %35 = tpu.matmul %33, %34, %cst_23 {dimension_numbers = #tpu.dot_dimension_numbers<[1], [0], [0], [1], [0, 0, 1, 1], [], []>} : vector<256x128xbf16>, vector<128x8xbf16>, vector<256x8xf32> -> vector<256x8xf32>
    %c0_24 = arith.constant 0 : index
    %c0_25 = arith.constant 0 : index
    %36 = vector.load %arg9[%c0_24, %c0_25] : memref<1x8xf32, #tpu.memory_space<vmem>>, vector<1x8xf32>
    %37 = vector.broadcast %36 : vector<1x8xf32> to vector<256x8xf32>
    %38 = arith.addf %35, %37 : vector<256x8xf32>
    %39 = math.tanh %38 : vector<256x8xf32>
    %c0_26 = arith.constant 0 : index
    %c0_27 = arith.constant 0 : index
    %40 = vector.load %arg10[%c0_26, %c0_27] : memref<256x8xf32, #tpu.memory_space<vmem>>, vector<256x8xf32>
    tpu.vector_store %arg10[%c0_26, %c0_27], %39 {strides = array<i32>} : memref<256x8xf32, #tpu.memory_space<vmem>>, vector<256x8xf32>,
    return
  }
  func.func @transform_0(%arg0: i32) -> (i32, i32) {
    %c0_i32 = arith.constant 0 : i32
    %c0_i32_0 = arith.constant 0 : i32
    return %arg0, %c0_i32 : i32, i32
  }
  func.func @transform_1(%arg0: i32) -> (i32, i32) {
    %c0_i32 = arith.constant 0 : i32
    %c0_i32_0 = arith.constant 0 : i32
    %c0_i32_1 = arith.constant 0 : i32
    return %c0_i32, %c0_i32_0 : i32, i32
  }
  func.func @transform_2(%arg0: i32) -> (i32, i32) {
    %c0_i32 = arith.constant 0 : i32
    %c0_i32_0 = arith.constant 0 : i32
    %c0_i32_1 = arith.constant 0 : i32
    return %c0_i32, %c0_i32_0 : i32, i32
  }
  func.func @transform_3(%arg0: i32) -> (i32, i32) {
    %c0_i32 = arith.constant 0 : i32
    %c0_i32_0 = arith.constant 0 : i32
    %c0_i32_1 = arith.constant 0 : i32
    return %c0_i32, %c0_i32_0 : i32, i32
  }
  func.func @transform_4(%arg0: i32) -> (i32, i32) {
    %c0_i32 = arith.constant 0 : i32
    %c0_i32_0 = arith.constant 0 : i32
    %c0_i32_1 = arith.constant 0 : i32
    return %c0_i32, %c0_i32_0 : i32, i32
  }
  func.func @transform_5(%arg0: i32) -> (i32, i32) {
    %c0_i32 = arith.constant 0 : i32
    %c0_i32_0 = arith.constant 0 : i32
    %c0_i32_1 = arith.constant 0 : i32
    return %c0_i32, %c0_i32_0 : i32, i32
  }
  func.func @transform_6(%arg0: i32) -> (i32, i32) {
    %c0_i32 = arith.constant 0 : i32
    %c0_i32_0 = arith.constant 0 : i32
    %c0_i32_1 = arith.constant 0 : i32
    return %c0_i32, %c0_i32_0 : i32, i32
  }
  func.func @transform_7(%arg0: i32) -> (i32, i32) {
    %c0_i32 = arith.constant 0 : i32
    %c0_i32_0 = arith.constant 0 : i32
    %c0_i32_1 = arith.constant 0 : i32
    return %c0_i32, %c0_i32_0 : i32, i32
  }
  func.func @transform_8(%arg0: i32) -> (i32, i32) {
    %c0_i32 = arith.constant 0 : i32
    %c0_i32_0 = arith.constant 0 : i32
    %c0_i32_1 = arith.constant 0 : i32
    return %c0_i32, %c0_i32_0 : i32, i32
  }
  func.func @transform_9(%arg0: i32) -> (i32, i32) {
    %c0_i32 = arith.constant 0 : i32
    %c0_i32_0 = arith.constant 0 : i32
    return %arg0, %c0_i32 : i32, i32
  }
}

</mosaic_0001>

<llo_original>
// kernel: tpu_custom_call.1
$region0: #{tpu_custom_call.1}
  #allocation0 [shape = 'u32[]', space=smem, size = 0x4, offset = 0x4, fixed_abs, tag = 'smem constant byte address 0x4 - core index']
  #allocation1 [shape = 'u32[144,128]{1,0:T(1,128)}', space=vmem, size = 0x12000, scoped, tag = 'internal scratch']
  %s0 = inlined_call_operand.vmem [shape: bf16[256,16], index: 0, kind: input, shape index: {}]
  %s1 = inlined_call_operand.vmem [shape: bf16[16,128], index: 1, kind: input, shape index: {}]
  %s2 = inlined_call_operand.vmem [shape: f32[1,128], index: 2, kind: input, shape index: {}]
  %s3 = inlined_call_operand.vmem [shape: bf16[128,128], index: 3, kind: input, shape index: {}]
  %s4 = inlined_call_operand.vmem [shape: f32[1,128], index: 4, kind: input, shape index: {}]
  %s5 = inlined_call_operand.vmem [shape: bf16[128,128], index: 5, kind: input, shape index: {}]
  %s6 = inlined_call_operand.vmem [shape: f32[1,128], index: 6, kind: input, shape index: {}]
  %s7 = inlined_call_operand.vmem [shape: bf16[128,8], index: 7, kind: input, shape index: {}]
  %s8 = inlined_call_operand.vmem [shape: f32[1,8], index: 8, kind: input, shape index: {}]
  %s9 = inlined_call_operand.vmem [shape: f32[256,8], index: 9, kind: output, shape index: {}]
  %s10 = sld [smem:[#allocation0]]
  $region46: #{tpu_custom_call.1} parent=0
    _
  %s12 = ssub.s32 1, %s10
  %s13 = scalar_select 0, %s12, %s10
  // Predicated region
  $region2: #{tpu_custom_call.1} parent=0 // pred_check
    _
  $region3: #{tpu_custom_call.1} parent=0 // pred_check_branch
    %15 = sbr.rel (0) target = $region5
  $region4: #{tpu_custom_call.1} parent=0 // pred_region
    _
  $region5: #{tpu_custom_call.1} parent=0 // pred_fallthru
    _
  // Predicated region
  $region6: #{tpu_custom_call.1} parent=0 // pred_check
    _
  $region7: #{tpu_custom_call.1} parent=0 // pred_check_branch
    %17 = sbr.rel (0) target = $region9
  $region8: #{tpu_custom_call.1} parent=0 // pred_region
    _
  $region9: #{tpu_custom_call.1} parent=0 // pred_fallthru
    _
  // Predicated region
  $region10: #{tpu_custom_call.1} parent=0 // pred_check
    _
  $region11: #{tpu_custom_call.1} parent=0 // pred_check_branch
    %19 = sbr.rel (0) target = $region13
  $region12: #{tpu_custom_call.1} parent=0 // pred_region
    _
  $region13: #{tpu_custom_call.1} parent=0 // pred_fallthru
    _
  // Predicated region
  $region14: #{tpu_custom_call.1} parent=0 // pred_check
    _
  $region15: #{tpu_custom_call.1} parent=0 // pred_check_branch
    %21 = sbr.rel (0) target = $region17
  $region16: #{tpu_custom_call.1} parent=0 // pred_region
    _
  $region17: #{tpu_custom_call.1} parent=0 // pred_fallthru
    _
  // Predicated region
  $region18: #{tpu_custom_call.1} parent=0 // pred_check
    _
  $region19: #{tpu_custom_call.1} parent=0 // pred_check_branch
    %23 = sbr.rel (0) target = $region21
  $region20: #{tpu_custom_call.1} parent=0 // pred_region
    _
  $region21: #{tpu_custom_call.1} parent=0 // pred_fallthru
    _
  // Predicated region
  $region22: #{tpu_custom_call.1} parent=0 // pred_check
    _
  $region23: #{tpu_custom_call.1} parent=0 // pred_check_branch
    %25 = sbr.rel (0) target = $region25
  $region24: #{tpu_custom_call.1} parent=0 // pred_region
    _
  $region25: #{tpu_custom_call.1} parent=0 // pred_fallthru
    _
  // Predicated region
  $region26: #{tpu_custom_call.1} parent=0 // pred_check
    _
  $region27: #{tpu_custom_call.1} parent=0 // pred_check_branch
    %27 = sbr.rel (0) target = $region29
  $region28: #{tpu_custom_call.1} parent=0 // pred_region
    _
  $region29: #{tpu_custom_call.1} parent=0 // pred_fallthru
    _
  // Predicated region
  $region30: #{tpu_custom_call.1} parent=0 // pred_check
    _
  $region31: #{tpu_custom_call.1} parent=0 // pred_check_branch
    %29 = sbr.rel (0) target = $region33
  $region32: #{tpu_custom_call.1} parent=0 // pred_region
    _
  $region33: #{tpu_custom_call.1} parent=0 // pred_fallthru
    _
  // Predicated region
  $region34: #{tpu_custom_call.1} parent=0 // pred_check
    _
  $region35: #{tpu_custom_call.1} parent=0 // pred_check_branch
    %31 = sbr.rel (0) target = $region37
  $region36: #{tpu_custom_call.1} parent=0 // pred_region
    _
  $region37: #{tpu_custom_call.1} parent=0 // pred_fallthru
    _
  %v33 = vld [vmem:[%s0] sm:$0xf]
  %v34 = vld [vmem:[%s0 + $0x4] sm:$0xf]
  %v35 = vld [vmem:[%s0 + $0x8] sm:$0xf]
  %v36 = vld [vmem:[%s0 + $0xc] sm:$0xf]
  %v37 = vld [vmem:[%s0 + $0x10] sm:$0xf]
  %v38 = vld [vmem:[%s0 + $0x14] sm:$0xf]
  %v39 = vld [vmem:[%s0 + $0x18] sm:$0xf]
  %v40 = vld [vmem:[%s0 + $0x1c] sm:$0xf]
  %v41 = vld [vmem:[%s0 + $0x20] sm:$0xf]
  %v42 = vld [vmem:[%s0 + $0x24] sm:$0xf]
  %v43 = vld [vmem:[%s0 + $0x28] sm:$0xf]
  %v44 = vld [vmem:[%s0 + $0x2c] sm:$0xf]
  %v45 = vld [vmem:[%s0 + $0x30] sm:$0xf]
  %v46 = vld [vmem:[%s0 + $0x34] sm:$0xf]
  %v47 = vld [vmem:[%s0 + $0x38] sm:$0xf]
  %v48 = vld [vmem:[%s0 + $0x3c] sm:$0xf]
  %v49 = vld [vmem:[%s0 + $0x40] sm:$0xf]
  %v50 = vld [vmem:[%s0 + $0x44] sm:$0xf]
  %v51 = vld [vmem:[%s0 + $0x48] sm:$0xf]
  %v52 = vld [vmem:[%s0 + $0x4c] sm:$0xf]
  %v53 = vld [vmem:[%s0 + $0x50] sm:$0xf]
  %v54 = vld [vmem:[%s0 + $0x54] sm:$0xf]
  %v55 = vld [vmem:[%s0 + $0x58] sm:$0xf]
  %v56 = vld [vmem:[%s0 + $0x5c] sm:$0xf]
  %v57 = vld [vmem:[%s0 + $0x60] sm:$0xf]
  %v58 = vld [vmem:[%s0 + $0x64] sm:$0xf]
  %v59 = vld [vmem:[%s0 + $0x68] sm:$0xf]
  %v60 = vld [vmem:[%s0 + $0x6c] sm:$0xf]
  %v61 = vld [vmem:[%s0 + $0x70] sm:$0xf]
  %v62 = vld [vmem:[%s0 + $0x74] sm:$0xf]
  %v63 = vld [vmem:[%s0 + $0x78] sm:$0xf]
  %v64 = vld [vmem:[%s0 + $0x7c] sm:$0xf]
  %v65 = vld [vmem:[%s1] sm:$0xf]
  %v66 = vld [vmem:[%s1 + $0x4] sm:$0xf]
  %v67 = vld [vmem:[%s2] sm:$0x1]
  %v69 = vlaneseq
  %v70 = vshrl.u32 %v69, 7
  %v71 = vsub.s32 0, %v70
  %v72 = vrot.slane %v67, %v71
  %v106 = vunpack.c.l.b16 %v33
  %v107 = vunpack.c.l.b16 %v34
  %v108 = vunpack.c.l.b16 %v35
  %v109 = vunpack.c.l.b16 %v36
  %v110 = vunpack.c.l.b16 %v37
  %v111 = vunpack.c.l.b16 %v38
  %v112 = vunpack.c.l.b16 %v39
  %v113 = vunpack.c.l.b16 %v40
  %v114 = vunpack.c.l.b16 %v41
  %v115 = vunpack.c.l.b16 %v42
  %v116 = vunpack.c.l.b16 %v43
  %v117 = vunpack.c.l.b16 %v44
  %v118 = vunpack.c.l.b16 %v45
  %v119 = vunpack.c.l.b16 %v46
  %v120 = vunpack.c.l.b16 %v47
  %v121 = vunpack.c.l.b16 %v48
  %v122 = vunpack.c.l.b16 %v49
  %v123 = vunpack.c.l.b16 %v50
  %v124 = vunpack.c.l.b16 %v51
  %v125 = vunpack.c.l.b16 %v52
  %v126 = vunpack.c.l.b16 %v53
  %v127 = vunpack.c.l.b16 %v54
  %v128 = vunpack.c.l.b16 %v55
  %v129 = vunpack.c.l.b16 %v56
  %v130 = vunpack.c.l.b16 %v57
  %v131 = vunpack.c.l.b16 %v58
  %v132 = vunpack.c.l.b16 %v59
  %v133 = vunpack.c.l.b16 %v60
  %v134 = vunpack.c.l.b16 %v61
  %v135 = vunpack.c.l.b16 %v62
  %v136 = vunpack.c.l.b16 %v63
  %v137 = vunpack.c.l.b16 %v64
  %v138 = vpack.c.b16 %v107, %v106
  %v139 = vpack.c.b16 %v109, %v108
  %v140 = vpack.c.b16 %v111, %v110
  %v141 = vpack.c.b16 %v113, %v112
  %v142 = vpack.c.b16 %v115, %v114
  %v143 = vpack.c.b16 %v117, %v116
  %v144 = vpack.c.b16 %v119, %v118
  %v145 = vpack.c.b16 %v121, %v120
  %v146 = vpack.c.b16 %v123, %v122
  %v147 = vpack.c.b16 %v125, %v124
  %v148 = vpack.c.b16 %v127, %v126
  %v149 = vpack.c.b16 %v129, %v128
  %v150 = vpack.c.b16 %v131, %v130
  %v151 = vpack.c.b16 %v133, %v132
  %v152 = vpack.c.b16 %v135, %v134
  %v153 = vpack.c.b16 %v137, %v136
  %v156 = vunpack.c.l.b16 %v65
  %v157 = vunpack.c.l.b16 %v66
  %v158 = vpack.c.b16 %v157, %v156
  %vm160 = vcmask 130048
  %v162 = vsel %vm160, %v138, 0
  %v165 = vsel %vm160, %v139, 0
  %v168 = vsel %vm160, %v140, 0
  %v171 = vsel %vm160, %v141, 0
  %v174 = vsel %vm160, %v142, 0
  %v177 = vsel %vm160, %v143, 0
  %v180 = vsel %vm160, %v144, 0
  %v183 = vsel %vm160, %v145, 0
  %v186 = vsel %vm160, %v146, 0
  %v189 = vsel %vm160, %v147, 0
  %v192 = vsel %vm160, %v148, 0
  %v195 = vsel %vm160, %v149, 0
  %v198 = vsel %vm160, %v150, 0
  %v201 = vsel %vm160, %v151, 0
  %v204 = vsel %vm160, %v152, 0
  %v207 = vsel %vm160, %v153, 0
  %209 = vmatprep.subr.bf16.mxu0 0
  %210 = vmatpush1.bf16.msra.mxu0 %v158
  %211 = vmatprep.subr.bf16.mxu0 0
  %212 = vmatpush1.bf16.msra.mxu0 0
  %213 = vmatprep.subr.bf16.mxu0 0
  %214 = vmatpush1.bf16.msra.mxu0 0
  %215 = vmatprep.subr.bf16.mxu0 0
  %216 = vmatpush1.bf16.msra.mxu0 0
  %217 = vmatprep.subr.bf16.mxu0 0
  %218 = vmatpush1.bf16.msra.mxu0 0
  %219 = vmatprep.subr.bf16.mxu0 0
  %220 = vmatpush1.bf16.msra.mxu0 0
  %221 = vmatprep.subr.bf16.mxu0 0
  %222 = vmatpush1.bf16.msra.mxu0 0
  %223 = vmatprep.subr.bf16.mxu0 0
  %224 = vmatpush1.bf16.msra.mxu0 0
  %225 = vmatprep.subr.bf16.mxu0 0
  %226 = vmatpush1.bf16.msra.mxu0 0
  %227 = vmatprep.subr.bf16.mxu0 0
  %228 = vmatpush1.bf16.msra.mxu0 0
  %229 = vmatprep.subr.bf16.mxu0 0
  %230 = vmatpush1.bf16.msra.mxu0 0
  %231 = vmatprep.subr.bf16.mxu0 0
  %232 = vmatpush1.bf16.msra.mxu0 0
  %233 = vmatprep.subr.bf16.mxu0 0
  %234 = vmatpush1.bf16.msra.mxu0 0
  %235 = vmatprep.subr.bf16.mxu0 0
  %236 = vmatpush1.bf16.msra.mxu0 0
  %237 = vmatprep.subr.bf16.mxu0 0
  %238 = vmatpush1.bf16.msra.mxu0 0
  %239 = vmatprep.subr.bf16.mxu0 0
  %240 = vmatpush1.bf16.msra.mxu0 0
  %241 = vmatprep.mubr.bf16.mxu0 0
  %242 = vmatmul.mubr.bf16.gmra.mrb[0].mxu0 %v162
  %v243 = vpop.f32.mrb[0].mxu0
  %v244 = vadd.f32 %v72, %v243
  %v245 = vpop.f32.mrb[0].mxu0
  %v246 = vpop.f32.mrb[0].mxu0
  %v247 = vadd.f32 %v72, %v246
  %v248 = vpop.f32.mrb[0].mxu0
  %249 = vmatprep.mubr.bf16.mxu0 0
  %250 = vmatmul.mubr.bf16.gmra.mrb[0].mxu0 %v165
  %v251 = vpop.f32.mrb[0].mxu0
  %v252 = vadd.f32 %v72, %v251
  %v253 = vpop.f32.mrb[0].mxu0
  %v254 = vpop.f32.mrb[0].mxu0
  %v255 = vadd.f32 %v72, %v254
  %v256 = vpop.f32.mrb[0].mxu0
  %257 = vmatprep.mubr.bf16.mxu0 0
  %258 = vmatmul.mubr.bf16.gmra.mrb[0].mxu0 %v168
  %v259 = vpop.f32.mrb[0].mxu0
  %v260 = vadd.f32 %v72, %v259
  %v261 = vpop.f32.mrb[0].mxu0
  %v262 = vpop.f32.mrb[0].mxu0
  %v263 = vadd.f32 %v72, %v262
  %v264 = vpop.f32.mrb[0].mxu0
  %265 = vmatprep.mubr.bf16.mxu0 0
  %266 = vmatmul.mubr.bf16.gmra.mrb[0].mxu0 %v171
  %v267 = vpop.f32.mrb[0].mxu0
  %v268 = vadd.f32 %v72, %v267
  %v269 = vpop.f32.mrb[0].mxu0
  %v270 = vpop.f32.mrb[0].mxu0
  %v271 = vadd.f32 %v72, %v270
  %v272 = vpop.f32.mrb[0].mxu0
  %273 = vmatprep.mubr.bf16.mxu0 0
  %274 = vmatmul.mubr.bf16.gmra.mrb[0].mxu0 %v174
  %v275 = vpop.f32.mrb[0].mxu0
  %v276 = vadd.f32 %v72, %v275
  %v277 = vpop.f32.mrb[0].mxu0
  %v278 = vpop.f32.mrb[0].mxu0
  %v279 = vadd.f32 %v72, %v278
  %v280 = vpop.f32.mrb[0].mxu0
  %281 = vmatprep.mubr.bf16.mxu0 0
  %282 = vmatmul.mubr.bf16.gmra.mrb[0].mxu0 %v177
  %v283 = vpop.f32.mrb[0].mxu0
  %v284 = vadd.f32 %v72, %v283
  %v285 = vpop.f32.mrb[0].mxu0
  %v286 = vpop.f32.mrb[0].mxu0
  %v287 = vadd.f32 %v72, %v286
  %v288 = vpop.f32.mrb[0].mxu0
  %289 = vmatprep.mubr.bf16.mxu0 0
  %290 = vmatmul.mubr.bf16.gmra.mrb[0].mxu0 %v180
  %v291 = vpop.f32.mrb[0].mxu0
  %v292 = vadd.f32 %v72, %v291
  %v293 = vpop.f32.mrb[0].mxu0
  %v294 = vpop.f32.mrb[0].mxu0
  %v295 = vadd.f32 %v72, %v294
  %v296 = vpop.f32.mrb[0].mxu0
  %297 = vmatprep.mubr.bf16.mxu0 0
  %298 = vmatmul.mubr.bf16.gmra.mrb[0].mxu0 %v183
  %v299 = vpop.f32.mrb[0].mxu0
  %v300 = vadd.f32 %v72, %v299
  %v301 = vpop.f32.mrb[0].mxu0
  %v302 = vpop.f32.mrb[0].mxu0
  %v303 = vadd.f32 %v72, %v302
  %v304 = vpop.f32.mrb[0].mxu0
  %305 = vmatprep.mubr.bf16.mxu0 0
  %306 = vmatmul.mubr.bf16.gmra.mrb[0].mxu0 %v186
  %v307 = vpop.f32.mrb[0].mxu0
  %v308 = vadd.f32 %v72, %v307
  %v309 = vpop.f32.mrb[0].mxu0
  %v310 = vpop.f32.mrb[0].mxu0
  %v311 = vadd.f32 %v72, %v310
  %v312 = vpop.f32.mrb[0].mxu0
  %313 = vmatprep.mubr.bf16.mxu0 0
  %314 = vmatmul.mubr.bf16.gmra.mrb[0].mxu0 %v189
  %v315 = vpop.f32.mrb[0].mxu0
  %v316 = vadd.f32 %v72, %v315
  %v317 = vpop.f32.mrb[0].mxu0
  %v318 = vpop.f32.mrb[0].mxu0
  %v319 = vadd.f32 %v72, %v318
  %v320 = vpop.f32.mrb[0].mxu0
  %321 = vmatprep.mubr.bf16.mxu0 0
  %322 = vmatmul.mubr.bf16.gmra.mrb[0].mxu0 %v192
  %v323 = vpop.f32.mrb[0].mxu0
  %v324 = vadd.f32 %v72, %v323
  %v325 = vpop.f32.mrb[0].mxu0
  %v326 = vpop.f32.mrb[0].mxu0
  %v327 = vadd.f32 %v72, %v326
  %v328 = vpop.f32.mrb[0].mxu0
  %329 = vmatprep.mubr.bf16.mxu0 0
  %330 = vmatmul.mubr.bf16.gmra.mrb[0].mxu0 %v195
  %v331 = vpop.f32.mrb[0].mxu0
  %v332 = vadd.f32 %v72, %v331
  %v333 = vpop.f32.mrb[0].mxu0
  %v334 = vpop.f32.mrb[0].mxu0
  %v335 = vadd.f32 %v72, %v334
  %v336 = vpop.f32.mrb[0].mxu0
  %337 = vmatprep.mubr.bf16.mxu0 0
  %338 = vmatmul.mubr.bf16.gmra.mrb[0].mxu0 %v198
  %v339 = vpop.f32.mrb[0].mxu0
  %v340 = vadd.f32 %v72, %v339
  %v341 = vpop.f32.mrb[0].mxu0
  %v342 = vpop.f32.mrb[0].mxu0
  %v343 = vadd.f32 %v72, %v342
  %v344 = vpop.f32.mrb[0].mxu0
  %345 = vmatprep.mubr.bf16.mxu0 0
  %346 = vmatmul.mubr.bf16.gmra.mrb[0].mxu0 %v201
  %v347 = vpop.f32.mrb[0].mxu0
  %v348 = vadd.f32 %v72, %v347
  %v349 = vpop.f32.mrb[0].mxu0
  %v350 = vpop.f32.mrb[0].mxu0
  %v351 = vadd.f32 %v72, %v350
  %v352 = vpop.f32.mrb[0].mxu0
  %353 = vmatprep.mubr.bf16.mxu0 0
  %354 = vmatmul.mubr.bf16.gmra.mrb[0].mxu0 %v204
  %v355 = vpop.f32.mrb[0].mxu0
  %v356 = vadd.f32 %v72, %v355
  %v357 = vpop.f32.mrb[0].mxu0
  %v358 = vpop.f32.mrb[0].mxu0
  %v359 = vadd.f32 %v72, %v358
  %v360 = vpop.f32.mrb[0].mxu0
  %361 = vmatprep.mubr.bf16.mxu0 0
  %362 = vmatmul.mubr.bf16.gmra.mrb[0].mxu0 %v207
  %v363 = vpop.f32.mrb[0].mxu0
  %v364 = vadd.f32 %v72, %v363
  %v365 = vpop.f32.mrb[0].mxu0
  %v366 = vpop.f32.mrb[0].mxu0
  %v367 = vadd.f32 %v72, %v366
  %v368 = vpop.f32.mrb[0].mxu0
  %369 = vdwg.mxu0
  %vm370 = vcmp.gt.f32.partialorder %v244, 0.0
  %vm371 = vcmp.gt.f32.partialorder %v247, 0.0
  %vm372 = vcmp.gt.f32.partialorder %v252, 0.0
  %vm373 = vcmp.gt.f32.partialorder %v255, 0.0
  %vm374 = vcmp.gt.f32.partialorder %v260, 0.0
  %vm375 = vcmp.gt.f32.partialorder %v263, 0.0
  %vm376 = vcmp.gt.f32.partialorder %v268, 0.0
  %vm377 = vcmp.gt.f32.partialorder %v271, 0.0
  %vm378 = vcmp.gt.f32.partialorder %v276, 0.0
  %vm379 = vcmp.gt.f32.partialorder %v279, 0.0
  %vm380 = vcmp.gt.f32.partialorder %v284, 0.0
  %vm381 = vcmp.gt.f32.partialorder %v287, 0.0
  %vm382 = vcmp.gt.f32.partialorder %v292, 0.0
  %vm383 = vcmp.gt.f32.partialorder %v295, 0.0
  %vm384 = vcmp.gt.f32.partialorder %v300, 0.0
  %vm385 = vcmp.gt.f32.partialorder %v303, 0.0
  %vm386 = vcmp.gt.f32.partialorder %v308, 0.0
  %vm387 = vcmp.gt.f32.partialorder %v311, 0.0
  %vm388 = vcmp.gt.f32.partialorder %v316, 0.0
  %vm389 = vcmp.gt.f32.partialorder %v319, 0.0
  %vm390 = vcmp.gt.f32.partialorder %v324, 0.0
  %vm391 = vcmp.gt.f32.partialorder %v327, 0.0
  %vm392 = vcmp.gt.f32.partialorder %v332, 0.0
  %vm393 = vcmp.gt.f32.partialorder %v335, 0.0
  %vm394 = vcmp.gt.f32.partialorder %v340, 0.0
  %vm395 = vcmp.gt.f32.partialorder %v343, 0.0
  %vm396 = vcmp.gt.f32.partialorder %v348, 0.0
  %vm397 = vcmp.gt.f32.partialorder %v351, 0.0
  %vm398 = vcmp.gt.f32.partialorder %v356, 0.0
  %vm399 = vcmp.gt.f32.partialorder %v359, 0.0
  %vm400 = vcmp.gt.f32.partialorder %v364, 0.0
  %vm401 = vcmp.gt.f32.partialorder %v367, 0.0
  %v402 = vmul.f32 %v244, 0.01
  %v403 = vmul.f32 %v247, 0.01
  %v404 = vmul.f32 %v252, 0.01
  %v405 = vmul.f32 %v255, 0.01
  %v406 = vmul.f32 %v260, 0.01
  %v407 = vmul.f32 %v263, 0.01
  %v408 = vmul.f32 %v268, 0.01
  %v409 = vmul.f32 %v271, 0.01
  %v410 = vmul.f32 %v276, 0.01
  %v411 = vmul.f32 %v279, 0.01
  %v412 = vmul.f32 %v284, 0.01
  %v413 = vmul.f32 %v287, 0.01
  %v414 = vmul.f32 %v292, 0.01
  %v415 = vmul.f32 %v295, 0.01
  %v416 = vmul.f32 %v300, 0.01
  %v417 = vmul.f32 %v303, 0.01
  %v418 = vmul.f32 %v308, 0.01
  %v419 = vmul.f32 %v311, 0.01
  %v420 = vmul.f32 %v316, 0.01
  %v421 = vmul.f32 %v319, 0.01
  %v422 = vmul.f32 %v324, 0.01
  %v423 = vmul.f32 %v327, 0.01
  %v424 = vmul.f32 %v332, 0.01
  %v425 = vmul.f32 %v335, 0.01
  %v426 = vmul.f32 %v340, 0.01
  %v427 = vmul.f32 %v343, 0.01
  %v428 = vmul.f32 %v348, 0.01
  %v429 = vmul.f32 %v351, 0.01
  %v430 = vmul.f32 %v356, 0.01
  %v431 = vmul.f32 %v359, 0.01
  %v432 = vmul.f32 %v364, 0.01
  %v433 = vmul.f32 %v367, 0.01
  %v434 = vsel %vm370, %v244, %v402
  %v435 = vsel %vm371, %v247, %v403
  %v436 = vsel %vm372, %v252, %v404
  %v437 = vsel %vm373, %v255, %v405
  %v438 = vsel %vm374, %v260, %v406
  %v439 = vsel %vm375, %v263, %v407
  %v440 = vsel %vm376, %v268, %v408
  %v441 = vsel %vm377, %v271, %v409
  %v442 = vsel %vm378, %v276, %v410
  %v443 = vsel %vm379, %v279, %v411
  %v444 = vsel %vm380, %v284, %v412
  %v445 = vsel %vm381, %v287, %v413
  %v446 = vsel %vm382, %v292, %v414
  %v447 = vsel %vm383, %v295, %v415
  %v448 = vsel %vm384, %v300, %v416
  %v449 = vsel %vm385, %v303, %v417
  %v450 = vsel %vm386, %v308, %v418
  %v451 = vsel %vm387, %v311, %v419
  %v452 = vsel %vm388, %v316, %v420
  %v453 = vsel %vm389, %v319, %v421
  %v454 = vsel %vm390, %v324, %v422
  %v455 = vsel %vm391, %v327, %v423
  %v456 = vsel %vm392, %v332, %v424
  %v457 = vsel %vm393, %v335, %v425
  %v458 = vsel %vm394, %v340, %v426
  %v459 = vsel %vm395, %v343, %v427
  %v460 = vsel %vm396, %v348, %v428
  %v461 = vsel %vm397, %v351, %v429
  %v462 = vsel %vm398, %v356, %v430
  %v463 = vsel %vm399, %v359, %v431
  %v464 = vsel %vm400, %v364, %v432
  %v465 = vsel %vm401, %v367, %v433
  %v466 = vpack.c.bf16 %v435, %v434
  %v467 = vpack.c.bf16 %v437, %v436
  %v468 = vpack.c.bf16 %v439, %v438
  %v469 = vpack.c.bf16 %v441, %v440
  %v470 = vpack.c.bf16 %v443, %v442
  %v471 = vpack.c.bf16 %v445, %v444
  %v472 = vpack.c.bf16 %v447, %v446
  %v473 = vpack.c.bf16 %v449, %v448
  %v474 = vpack.c.bf16 %v451, %v450
  %v475 = vpack.c.bf16 %v453, %v452
  %v476 = vpack.c.bf16 %v455, %v454
  %v477 = vpack.c.bf16 %v457, %v456
  %v478 = vpack.c.bf16 %v459, %v458
  %v479 = vpack.c.bf16 %v461, %v460
  %v480 = vpack.c.bf16 %v463, %v462
  %v481 = vpack.c.bf16 %v465, %v464
  %v482 = vld [vmem:[%s3] sm:$0xf]
  %v483 = vld [vmem:[%s3 + $0x4] sm:$0xf]
  %v484 = vld [vmem:[%s3 + $0x8] sm:$0xf]
  %v485 = vld [vmem:[%s3 + $0xc] sm:$0xf]
  %v486 = vld [vmem:[%s3 + $0x10] sm:$0xf]
  %v487 = vld [vmem:[%s3 + $0x14] sm:$0xf]
  %v488 = vld [vmem:[%s3 + $0x18] sm:$0xf]
  %v489 = vld [vmem:[%s3 + $0x1c] sm:$0xf]
  %v490 = vld [vmem:[%s3 + $0x20] sm:$0xf]
  %v491 = vld [vmem:[%s3 + $0x24] sm:$0xf]
  %v492 = vld [vmem:[%s3 + $0x28] sm:$0xf]
  %v493 = vld [vmem:[%s3 + $0x2c] sm:$0xf]
  %v494 = vld [vmem:[%s3 + $0x30] sm:$0xf]
  %v495 = vld [vmem:[%s3 + $0x34] sm:$0xf]
  %v496 = vld [vmem:[%s3 + $0x38] sm:$0xf]
  %v497 = vld [vmem:[%s3 + $0x3c] sm:$0xf]
  %v498 = vld [vmem:[%s4] sm:$0x1]
  %v500 = vlaneseq
  %v501 = vshrl.u32 %v500, 7
  %v502 = vsub.s32 0, %v501
  %v503 = vrot.slane %v498, %v502
  %v521 = vunpack.c.l.b16 %v482
  %v522 = vunpack.c.l.b16 %v483
  %v523 = vunpack.c.l.b16 %v484
  %v524 = vunpack.c.l.b16 %v485
  %v525 = vunpack.c.l.b16 %v486
  %v526 = vunpack.c.l.b16 %v487
  %v527 = vunpack.c.l.b16 %v488
  %v528 = vunpack.c.l.b16 %v489
  %v529 = vunpack.c.l.b16 %v490
  %v530 = vunpack.c.l.b16 %v491
  %v531 = vunpack.c.l.b16 %v492
  %v532 = vunpack.c.l.b16 %v493
  %v533 = vunpack.c.l.b16 %v494
  %v534 = vunpack.c.l.b16 %v495
  %v535 = vunpack.c.l.b16 %v496
  %v536 = vunpack.c.l.b16 %v497
  %v537 = vpack.c.b16 %v522, %v521
  %v538 = vpack.c.b16 %v524, %v523
  %v539 = vpack.c.b16 %v526, %v525
  %v540 = vpack.c.b16 %v528, %v527
  %v541 = vpack.c.b16 %v530, %v529
  %v542 = vpack.c.b16 %v532, %v531
  %v543 = vpack.c.b16 %v534, %v533
  %v544 = vpack.c.b16 %v536, %v535
  %553 = vmatprep.subr.bf16.mxu0 0
  %554 = vmatpush1.bf16.msra.mxu0 %v537
  %555 = vmatprep.subr.bf16.mxu0 0
  %556 = vmatpush1.bf16.msra.mxu0 %v538
  %557 = vmatprep.subr.bf16.mxu0 0
  %558 = vmatpush1.bf16.msra.mxu0 %v539
  %559 = vmatprep.subr.bf16.mxu0 0
  %560 = vmatpush1.bf16.msra.mxu0 %v540
  %561 = vmatprep.subr.bf16.mxu0 0
  %562 = vmatpush1.bf16.msra.mxu0 %v541
  %563 = vmatprep.subr.bf16.mxu0 0
  %564 = vmatpush1.bf16.msra.mxu0 %v542
  %565 = vmatprep.subr.bf16.mxu0 0
  %566 = vmatpush1.bf16.msra.mxu0 %v543
  %567 = vmatprep.subr.bf16.mxu0 0
  %568 = vmatpush1.bf16.msra.mxu0 %v544
  %569 = vmatprep.subr.bf16.mxu0 0
  %570 = vmatpush1.bf16.msra.mxu0 0
  %571 = vmatprep.subr.bf16.mxu0 0
  %572 = vmatpush1.bf16.msra.mxu0 0
  %573 = vmatprep.subr.bf16.mxu0 0
  %574 = vmatpush1.bf16.msra.mxu0 0
  %575 = vmatprep.subr.bf16.mxu0 0
  %576 = vmatpush1.bf16.msra.mxu0 0
  %577 = vmatprep.subr.bf16.mxu0 0
  %578 = vmatpush1.bf16.msra.mxu0 0
  %579 = vmatprep.subr.bf16.mxu0 0
  %580 = vmatpush1.bf16.msra.mxu0 0
  %581 = vmatprep.subr.bf16.mxu0 0
  %582 = vmatpush1.bf16.msra.mxu0 0
  %583 = vmatprep.subr.bf16.mxu0 0
  %584 = vmatpush1.bf16.msra.mxu0 0
  %585 = vmatprep.mubr.bf16.mxu0 0
  %586 = vmatmul.mubr.bf16.gmra.mrb[0].mxu0 %v466
  %v587 = vpop.f32.mrb[0].mxu0
  %v588 = vadd.f32 %v503, %v587
  %v589 = vpop.f32.mrb[0].mxu0
  %v590 = vpop.f32.mrb[0].mxu0
  %v591 = vadd.f32 %v503, %v590
  %v592 = vpop.f32.mrb[0].mxu0
  %593 = vmatprep.mubr.bf16.mxu0 0
  %594 = vmatmul.mubr.bf16.gmra.mrb[0].mxu0 %v467
  %v595 = vpop.f32.mrb[0].mxu0
  %v596 = vadd.f32 %v503, %v595
  %v597 = vpop.f32.mrb[0].mxu0
  %v598 = vpop.f32.mrb[0].mxu0
  %v599 = vadd.f32 %v503, %v598
  %v600 = vpop.f32.mrb[0].mxu0
  %601 = vmatprep.mubr.bf16.mxu0 0
  %602 = vmatmul.mubr.bf16.gmra.mrb[0].mxu0 %v468
  %v603 = vpop.f32.mrb[0].mxu0
  %v604 = vadd.f32 %v503, %v603
  %v605 = vpop.f32.mrb[0].mxu0
  %v606 = vpop.f32.mrb[0].mxu0
  %v607 = vadd.f32 %v503, %v606
  %v608 = vpop.f32.mrb[0].mxu0
  %609 = vmatprep.mubr.bf16.mxu0 0
  %610 = vmatmul.mubr.bf16.gmra.mrb[0].mxu0 %v469
  %v611 = vpop.f32.mrb[0].mxu0
  %v612 = vadd.f32 %v503, %v611
  %v613 = vpop.f32.mrb[0].mxu0
  %v614 = vpop.f32.mrb[0].mxu0
  %v615 = vadd.f32 %v503, %v614
  %v616 = vpop.f32.mrb[0].mxu0
  %617 = vmatprep.mubr.bf16.mxu0 0
  %618 = vmatmul.mubr.bf16.gmra.mrb[0].mxu0 %v470
  %v619 = vpop.f32.mrb[0].mxu0
  %v620 = vadd.f32 %v503, %v619
  %v621 = vpop.f32.mrb[0].mxu0
  %v622 = vpop.f32.mrb[0].mxu0
  %v623 = vadd.f32 %v503, %v622
  %v624 = vpop.f32.mrb[0].mxu0
  %625 = vmatprep.mubr.bf16.mxu0 0
  %626 = vmatmul.mubr.bf16.gmra.mrb[0].mxu0 %v471
  %v627 = vpop.f32.mrb[0].mxu0
  %v628 = vadd.f32 %v503, %v627
  %v629 = vpop.f32.mrb[0].mxu0
  %v630 = vpop.f32.mrb[0].mxu0
  %v631 = vadd.f32 %v503, %v630
  %v632 = vpop.f32.mrb[0].mxu0
  %633 = vmatprep.mubr.bf16.mxu0 0
  %634 = vmatmul.mubr.bf16.gmra.mrb[0].mxu0 %v472
  %v635 = vpop.f32.mrb[0].mxu0
  %v636 = vadd.f32 %v503, %v635
  %v637 = vpop.f32.mrb[0].mxu0
  %v638 = vpop.f32.mrb[0].mxu0
  %v639 = vadd.f32 %v503, %v638
  %v640 = vpop.f32.mrb[0].mxu0
  %641 = vmatprep.mubr.bf16.mxu0 0
  %642 = vmatmul.mubr.bf16.gmra.mrb[0].mxu0 %v473
  %v643 = vpop.f32.mrb[0].mxu0
  %v644 = vadd.f32 %v503, %v643
  %v645 = vpop.f32.mrb[0].mxu0
  %v646 = vpop.f32.mrb[0].mxu0
  %v647 = vadd.f32 %v503, %v646
  %v648 = vpop.f32.mrb[0].mxu0
  %649 = vmatprep.mubr.bf16.mxu0 0
  %650 = vmatmul.mubr.bf16.gmra.mrb[0].mxu0 %v474
  %v651 = vpop.f32.mrb[0].mxu0
  %v652 = vadd.f32 %v503, %v651
  %v653 = vpop.f32.mrb[0].mxu0
  %v654 = vpop.f32.mrb[0].mxu0
  %v655 = vadd.f32 %v503, %v654
  %v656 = vpop.f32.mrb[0].mxu0
  %657 = vmatprep.mubr.bf16.mxu0 0
  %658 = vmatmul.mubr.bf16.gmra.mrb[0].mxu0 %v475
  %v659 = vpop.f32.mrb[0].mxu0
  %v660 = vadd.f32 %v503, %v659
  %v661 = vpop.f32.mrb[0].mxu0
  %v662 = vpop.f32.mrb[0].mxu0
  %v663 = vadd.f32 %v503, %v662
  %v664 = vpop.f32.mrb[0].mxu0
  %665 = vmatprep.mubr.bf16.mxu0 0
  %666 = vmatmul.mubr.bf16.gmra.mrb[0].mxu0 %v476
  %v667 = vpop.f32.mrb[0].mxu0
  %v668 = vadd.f32 %v503, %v667
  %v669 = vpop.f32.mrb[0].mxu0
  %v670 = vpop.f32.mrb[0].mxu0
  %v671 = vadd.f32 %v503, %v670
  %v672 = vpop.f32.mrb[0].mxu0
  %673 = vmatprep.mubr.bf16.mxu0 0
  %674 = vmatmul.mubr.bf16.gmra.mrb[0].mxu0 %v477
  %v675 = vpop.f32.mrb[0].mxu0
  %v676 = vadd.f32 %v503, %v675
  %v677 = vpop.f32.mrb[0].mxu0
  %v678 = vpop.f32.mrb[0].mxu0
  %v679 = vadd.f32 %v503, %v678
  %v680 = vpop.f32.mrb[0].mxu0
  %681 = vmatprep.mubr.bf16.mxu0 0
  %682 = vmatmul.mubr.bf16.gmra.mrb[0].mxu0 %v478
  %v683 = vpop.f32.mrb[0].mxu0
  %v684 = vadd.f32 %v503, %v683
  %v685 = vpop.f32.mrb[0].mxu0
  %v686 = vpop.f32.mrb[0].mxu0
  %v687 = vadd.f32 %v503, %v686
  %v688 = vpop.f32.mrb[0].mxu0
  %689 = vmatprep.mubr.bf16.mxu0 0
  %690 = vmatmul.mubr.bf16.gmra.mrb[0].mxu0 %v479
  %v691 = vpop.f32.mrb[0].mxu0
  %v692 = vadd.f32 %v503, %v691
  %v693 = vpop.f32.mrb[0].mxu0
  %v694 = vpop.f32.mrb[0].mxu0
  %v695 = vadd.f32 %v503, %v694
  %v696 = vpop.f32.mrb[0].mxu0
  %697 = vmatprep.mubr.bf16.mxu0 0
  %698 = vmatmul.mubr.bf16.gmra.mrb[0].mxu0 %v480
  %v699 = vpop.f32.mrb[0].mxu0
  %v700 = vadd.f32 %v503, %v699
  %v701 = vpop.f32.mrb[0].mxu0
  %v702 = vpop.f32.mrb[0].mxu0
  %v703 = vadd.f32 %v503, %v702
  %v704 = vpop.f32.mrb[0].mxu0
  %705 = vmatprep.mubr.bf16.mxu0 0
  %706 = vmatmul.mubr.bf16.gmra.mrb[0].mxu0 %v481
  %v707 = vpop.f32.mrb[0].mxu0
  %v708 = vadd.f32 %v503, %v707
  %v709 = vpop.f32.mrb[0].mxu0
  %v710 = vpop.f32.mrb[0].mxu0
  %v711 = vadd.f32 %v503, %v710
  %v712 = vpop.f32.mrb[0].mxu0
  %713 = vdwg.mxu0
  %vm714 = vcmp.gt.f32.partialorder %v588, 0.0
  %vm715 = vcmp.gt.f32.partialorder %v591, 0.0
  %vm716 = vcmp.gt.f32.partialorder %v596, 0.0
  %vm717 = vcmp.gt.f32.partialorder %v599, 0.0
  %vm718 = vcmp.gt.f32.partialorder %v604, 0.0
  %vm719 = vcmp.gt.f32.partialorder %v607, 0.0
  %vm720 = vcmp.gt.f32.partialorder %v612, 0.0
  %vm721 = vcmp.gt.f32.partialorder %v615, 0.0
  %vm722 = vcmp.gt.f32.partialorder %v620, 0.0
  %vm723 = vcmp.gt.f32.partialorder %v623, 0.0
  %vm724 = vcmp.gt.f32.partialorder %v628, 0.0
  %vm725 = vcmp.gt.f32.partialorder %v631, 0.0
  %vm726 = vcmp.gt.f32.partialorder %v636, 0.0
  %vm727 = vcmp.gt.f32.partialorder %v639, 0.0
  %vm728 = vcmp.gt.f32.partialorder %v644, 0.0
  %vm729 = vcmp.gt.f32.partialorder %v647, 0.0
  %vm730 = vcmp.gt.f32.partialorder %v652, 0.0
  %vm731 = vcmp.gt.f32.partialorder %v655, 0.0
  %vm732 = vcmp.gt.f32.partialorder %v660, 0.0
  %vm733 = vcmp.gt.f32.partialorder %v663, 0.0
  %vm734 = vcmp.gt.f32.partialorder %v668, 0.0
  %vm735 = vcmp.gt.f32.partialorder %v671, 0.0
  %vm736 = vcmp.gt.f32.partialorder %v676, 0.0
  %vm737 = vcmp.gt.f32.partialorder %v679, 0.0
  %vm738 = vcmp.gt.f32.partialorder %v684, 0.0
  %vm739 = vcmp.gt.f32.partialorder %v687, 0.0
  %vm740 = vcmp.gt.f32.partialorder %v692, 0.0
  %vm741 = vcmp.gt.f32.partialorder %v695, 0.0
  %vm742 = vcmp.gt.f32.partialorder %v700, 0.0
  %vm743 = vcmp.gt.f32.partialorder %v703, 0.0
  %vm744 = vcmp.gt.f32.partialorder %v708, 0.0
  %vm745 = vcmp.gt.f32.partialorder %v711, 0.0
  %v746 = vmul.f32 %v588, 0.01
  %v747 = vmul.f32 %v591, 0.01
  %v748 = vmul.f32 %v596, 0.01
  %v749 = vmul.f32 %v599, 0.01
  %v750 = vmul.f32 %v604, 0.01
  %v751 = vmul.f32 %v607, 0.01
  %v752 = vmul.f32 %v612, 0.01
  %v753 = vmul.f32 %v615, 0.01
  %v754 = vmul.f32 %v620, 0.01
  %v755 = vmul.f32 %v623, 0.01
  %v756 = vmul.f32 %v628, 0.01
  %v757 = vmul.f32 %v631, 0.01
  %v758 = vmul.f32 %v636, 0.01
  %v759 = vmul.f32 %v639, 0.01
  %v760 = vmul.f32 %v644, 0.01
  %v761 = vmul.f32 %v647, 0.01
  %v762 = vmul.f32 %v652, 0.01
  %v763 = vmul.f32 %v655, 0.01
  %v764 = vmul.f32 %v660, 0.01
  %v765 = vmul.f32 %v663, 0.01
  %v766 = vmul.f32 %v668, 0.01
  %v767 = vmul.f32 %v671, 0.01
  %v768 = vmul.f32 %v676, 0.01
  %v769 = vmul.f32 %v679, 0.01
  %v770 = vmul.f32 %v684, 0.01
  %v771 = vmul.f32 %v687, 0.01
  %v772 = vmul.f32 %v692, 0.01
  %v773 = vmul.f32 %v695, 0.01
  %v774 = vmul.f32 %v700, 0.01
  %v775 = vmul.f32 %v703, 0.01
  %v776 = vmul.f32 %v708, 0.01
  %v777 = vmul.f32 %v711, 0.01
  %v778 = vsel %vm714, %v588, %v746
  %v779 = vsel %vm715, %v591, %v747
  %v780 = vsel %vm716, %v596, %v748
  %v781 = vsel %vm717, %v599, %v749
  %v782 = vsel %vm718, %v604, %v750
  %v783 = vsel %vm719, %v607, %v751
  %v784 = vsel %vm720, %v612, %v752
  %v785 = vsel %vm721, %v615, %v753
  %v786 = vsel %vm722, %v620, %v754
  %v787 = vsel %vm723, %v623, %v755
  %v788 = vsel %vm724, %v628, %v756
  %v789 = vsel %vm725, %v631, %v757
  %v790 = vsel %vm726, %v636, %v758
  %v791 = vsel %vm727, %v639, %v759
  %v792 = vsel %vm728, %v644, %v760
  %v793 = vsel %vm729, %v647, %v761
  %v794 = vsel %vm730, %v652, %v762
  %v795 = vsel %vm731, %v655, %v763
  %v796 = vsel %vm732, %v660, %v764
  %v797 = vsel %vm733, %v663, %v765
  %v798 = vsel %vm734, %v668, %v766
  %v799 = vsel %vm735, %v671, %v767
  %v800 = vsel %vm736, %v676, %v768
  %v801 = vsel %vm737, %v679, %v769
  %v802 = vsel %vm738, %v684, %v770
  %v803 = vsel %vm739, %v687, %v771
  %v804 = vsel %vm740, %v692, %v772
  %v805 = vsel %vm741, %v695, %v773
  %v806 = vsel %vm742, %v700, %v774
  %v807 = vsel %vm743, %v703, %v775
  %v808 = vsel %vm744, %v708, %v776
  %v809 = vsel %vm745, %v711, %v777
  %v810 = vpack.c.bf16 %v779, %v778
  %v811 = vpack.c.bf16 %v781, %v780
  %v812 = vpack.c.bf16 %v783, %v782
  %v813 = vpack.c.bf16 %v785, %v784
  %v814 = vpack.c.bf16 %v787, %v786
  %v815 = vpack.c.bf16 %v789, %v788
  %v816 = vpack.c.bf16 %v791, %v790
  %v817 = vpack.c.bf16 %v793, %v792
  %v818 = vpack.c.bf16 %v795, %v794
  %v819 = vpack.c.bf16 %v797, %v796
  %v820 = vpack.c.bf16 %v799, %v798
  %v821 = vpack.c.bf16 %v801, %v800
  %v822 = vpack.c.bf16 %v803, %v802
  %v823 = vpack.c.bf16 %v805, %v804
  %v824 = vpack.c.bf16 %v807, %v806
  %v825 = vpack.c.bf16 %v809, %v808
  %v826 = vld [vmem:[%s5] sm:$0xf]
  %v827 = vld [vmem:[%s5 + $0x4] sm:$0xf]
  %v828 = vld [vmem:[%s5 + $0x8] sm:$0xf]
  %v829 = vld [vmem:[%s5 + $0xc] sm:$0xf]
  %v830 = vld [vmem:[%s5 + $0x10] sm:$0xf]
  %v831 = vld [vmem:[%s5 + $0x14] sm:$0xf]
  %v832 = vld [vmem:[%s5 + $0x18] sm:$0xf]
  %v833 = vld [vmem:[%s5 + $0x1c] sm:$0xf]
  %v834 = vld [vmem:[%s5 + $0x20] sm:$0xf]
  %v835 = vld [vmem:[%s5 + $0x24] sm:$0xf]
  %v836 = vld [vmem:[%s5 + $0x28] sm:$0xf]
  %v837 = vld [vmem:[%s5 + $0x2c] sm:$0xf]
  %v838 = vld [vmem:[%s5 + $0x30] sm:$0xf]
  %v839 = vld [vmem:[%s5 + $0x34] sm:$0xf]
  %v840 = vld [vmem:[%s5 + $0x38] sm:$0xf]
  %v841 = vld [vmem:[%s5 + $0x3c] sm:$0xf]
  %v842 = vld [vmem:[%s6] sm:$0x1]
  %v844 = vlaneseq
  %v845 = vshrl.u32 %v844, 7
  %v846 = vsub.s32 0, %v845
  %v847 = vrot.slane %v842, %v846
  %v865 = vunpack.c.l.b16 %v826
  %v866 = vunpack.c.l.b16 %v827
  %v867 = vunpack.c.l.b16 %v828
  %v868 = vunpack.c.l.b16 %v829
  %v869 = vunpack.c.l.b16 %v830
  %v870 = vunpack.c.l.b16 %v831
  %v871 = vunpack.c.l.b16 %v832
  %v872 = vunpack.c.l.b16 %v833
  %v873 = vunpack.c.l.b16 %v834
  %v874 = vunpack.c.l.b16 %v835
  %v875 = vunpack.c.l.b16 %v836
  %v876 = vunpack.c.l.b16 %v837
  %v877 = vunpack.c.l.b16 %v838
  %v878 = vunpack.c.l.b16 %v839
  %v879 = vunpack.c.l.b16 %v840
  %v880 = vunpack.c.l.b16 %v841
  %v881 = vpack.c.b16 %v866, %v865
  %v882 = vpack.c.b16 %v868, %v867
  %v883 = vpack.c.b16 %v870, %v869
  %v884 = vpack.c.b16 %v872, %v871
  %v885 = vpack.c.b16 %v874, %v873
  %v886 = vpack.c.b16 %v876, %v875
  %v887 = vpack.c.b16 %v878, %v877
  %v888 = vpack.c.b16 %v880, %v879
  %897 = vmatprep.subr.bf16.mxu0 0
  %898 = vmatpush1.bf16.msra.mxu0 %v881
  %899 = vmatprep.subr.bf16.mxu0 0
  %900 = vmatpush1.bf16.msra.mxu0 %v882
  %901 = vmatprep.subr.bf16.mxu0 0
  %902 = vmatpush1.bf16.msra.mxu0 %v883
  %903 = vmatprep.subr.bf16.mxu0 0
  %904 = vmatpush1.bf16.msra.mxu0 %v884
  %905 = vmatprep.subr.bf16.mxu0 0
  %906 = vmatpush1.bf16.msra.mxu0 %v885
  %907 = vmatprep.subr.bf16.mxu0 0
  %908 = vmatpush1.bf16.msra.mxu0 %v886
  %909 = vmatprep.subr.bf16.mxu0 0
  %910 = vmatpush1.bf16.msra.mxu0 %v887
  %911 = vmatprep.subr.bf16.mxu0 0
  %912 = vmatpush1.bf16.msra.mxu0 %v888
  %913 = vmatprep.subr.bf16.mxu0 0
  %914 = vmatpush1.bf16.msra.mxu0 0
  %915 = vmatprep.subr.bf16.mxu0 0
  %916 = vmatpush1.bf16.msra.mxu0 0
  %917 = vmatprep.subr.bf16.mxu0 0
  %918 = vmatpush1.bf16.msra.mxu0 0
  %919 = vmatprep.subr.bf16.mxu0 0
  %920 = vmatpush1.bf16.msra.mxu0 0
  %921 = vmatprep.subr.bf16.mxu0 0
  %922 = vmatpush1.bf16.msra.mxu0 0
  %923 = vmatprep.subr.bf16.mxu0 0
  %924 = vmatpush1.bf16.msra.mxu0 0
  %925 = vmatprep.subr.bf16.mxu0 0
  %926 = vmatpush1.bf16.msra.mxu0 0
  %927 = vmatprep.subr.bf16.mxu0 0
  %928 = vmatpush1.bf16.msra.mxu0 0
  %929 = vmatprep.mubr.bf16.mxu0 0
  %930 = vmatmul.mubr.bf16.gmra.mrb[0].mxu0 %v810
  %v931 = vpop.f32.mrb[0].mxu0
  %v932 = vadd.f32 %v847, %v931
  %v933 = vpop.f32.mrb[0].mxu0
  %v934 = vpop.f32.mrb[0].mxu0
  %v935 = vadd.f32 %v847, %v934
  %v936 = vpop.f32.mrb[0].mxu0
  %937 = vmatprep.mubr.bf16.mxu0 0
  %938 = vmatmul.mubr.bf16.gmra.mrb[0].mxu0 %v811
  %v939 = vpop.f32.mrb[0].mxu0
  %v940 = vadd.f32 %v847, %v939
  %v941 = vpop.f32.mrb[0].mxu0
  %v942 = vpop.f32.mrb[0].mxu0
  %v943 = vadd.f32 %v847, %v942
  %v944 = vpop.f32.mrb[0].mxu0
  %945 = vmatprep.mubr.bf16.mxu0 0
  %946 = vmatmul.mubr.bf16.gmra.mrb[0].mxu0 %v812
  %v947 = vpop.f32.mrb[0].mxu0
  %v948 = vadd.f32 %v847, %v947
  %v949 = vpop.f32.mrb[0].mxu0
  %v950 = vpop.f32.mrb[0].mxu0
  %v951 = vadd.f32 %v847, %v950
  %v952 = vpop.f32.mrb[0].mxu0
  %953 = vmatprep.mubr.bf16.mxu0 0
  %954 = vmatmul.mubr.bf16.gmra.mrb[0].mxu0 %v813
  %v955 = vpop.f32.mrb[0].mxu0
  %v956 = vadd.f32 %v847, %v955
  %v957 = vpop.f32.mrb[0].mxu0
  %v958 = vpop.f32.mrb[0].mxu0
  %v959 = vadd.f32 %v847, %v958
  %v960 = vpop.f32.mrb[0].mxu0
  %961 = vmatprep.mubr.bf16.mxu0 0
  %962 = vmatmul.mubr.bf16.gmra.mrb[0].mxu0 %v814
  %v963 = vpop.f32.mrb[0].mxu0
  %v964 = vadd.f32 %v847, %v963
  %v965 = vpop.f32.mrb[0].mxu0
  %v966 = vpop.f32.mrb[0].mxu0
  %v967 = vadd.f32 %v847, %v966
  %v968 = vpop.f32.mrb[0].mxu0
  %969 = vmatprep.mubr.bf16.mxu0 0
  %970 = vmatmul.mubr.bf16.gmra.mrb[0].mxu0 %v815
  %v971 = vpop.f32.mrb[0].mxu0
  %v972 = vadd.f32 %v847, %v971
  %v973 = vpop.f32.mrb[0].mxu0
  %v974 = vpop.f32.mrb[0].mxu0
  %v975 = vadd.f32 %v847, %v974
  %v976 = vpop.f32.mrb[0].mxu0
  %977 = vmatprep.mubr.bf16.mxu0 0
  %978 = vmatmul.mubr.bf16.gmra.mrb[0].mxu0 %v816
  %v979 = vpop.f32.mrb[0].mxu0
  %v980 = vadd.f32 %v847, %v979
  %v981 = vpop.f32.mrb[0].mxu0
  %v982 = vpop.f32.mrb[0].mxu0
  %v983 = vadd.f32 %v847, %v982
  %v984 = vpop.f32.mrb[0].mxu0
  %985 = vmatprep.mubr.bf16.mxu0 0
  %986 = vmatmul.mubr.bf16.gmra.mrb[0].mxu0 %v817
  %v987 = vpop.f32.mrb[0].mxu0
  %v988 = vadd.f32 %v847, %v987
  %v989 = vpop.f32.mrb[0].mxu0
  %v990 = vpop.f32.mrb[0].mxu0
  %v991 = vadd.f32 %v847, %v990
  %v992 = vpop.f32.mrb[0].mxu0
  %993 = vmatprep.mubr.bf16.mxu0 0
  %994 = vmatmul.mubr.bf16.gmra.mrb[0].mxu0 %v818
  %v995 = vpop.f32.mrb[0].mxu0
  %v996 = vadd.f32 %v847, %v995
  %v997 = vpop.f32.mrb[0].mxu0
  %v998 = vpop.f32.mrb[0].mxu0
  %v999 = vadd.f32 %v847, %v998
  %v1000 = vpop.f32.mrb[0].mxu0
  %1001 = vmatprep.mubr.bf16.mxu0 0
  %1002 = vmatmul.mubr.bf16.gmra.mrb[0].mxu0 %v819
  %v1003 = vpop.f32.mrb[0].mxu0
  %v1004 = vadd.f32 %v847, %v1003
  %v1005 = vpop.f32.mrb[0].mxu0
  %v1006 = vpop.f32.mrb[0].mxu0
  %v1007 = vadd.f32 %v847, %v1006
  %v1008 = vpop.f32.mrb[0].mxu0
  %1009 = vmatprep.mubr.bf16.mxu0 0
  %1010 = vmatmul.mubr.bf16.gmra.mrb[0].mxu0 %v820
  %v1011 = vpop.f32.mrb[0].mxu0
  %v1012 = vadd.f32 %v847, %v1011
  %v1013 = vpop.f32.mrb[0].mxu0
  %v1014 = vpop.f32.mrb[0].mxu0
  %v1015 = vadd.f32 %v847, %v1014
  %v1016 = vpop.f32.mrb[0].mxu0
  %1017 = vmatprep.mubr.bf16.mxu0 0
  %1018 = vmatmul.mubr.bf16.gmra.mrb[0].mxu0 %v821
  %v1019 = vpop.f32.mrb[0].mxu0
  %v1020 = vadd.f32 %v847, %v1019
  %v1021 = vpop.f32.mrb[0].mxu0
  %v1022 = vpop.f32.mrb[0].mxu0
  %v1023 = vadd.f32 %v847, %v1022
  %v1024 = vpop.f32.mrb[0].mxu0
  %1025 = vmatprep.mubr.bf16.mxu0 0
  %1026 = vmatmul.mubr.bf16.gmra.mrb[0].mxu0 %v822
  %v1027 = vpop.f32.mrb[0].mxu0
  %v1028 = vadd.f32 %v847, %v1027
  %v1029 = vpop.f32.mrb[0].mxu0
  %v1030 = vpop.f32.mrb[0].mxu0
  %v1031 = vadd.f32 %v847, %v1030
  %v1032 = vpop.f32.mrb[0].mxu0
  %1033 = vmatprep.mubr.bf16.mxu0 0
  %1034 = vmatmul.mubr.bf16.gmra.mrb[0].mxu0 %v823
  %v1035 = vpop.f32.mrb[0].mxu0
  %v1036 = vadd.f32 %v847, %v1035
  %v1037 = vpop.f32.mrb[0].mxu0
  %v1038 = vpop.f32.mrb[0].mxu0
  %v1039 = vadd.f32 %v847, %v1038
  %v1040 = vpop.f32.mrb[0].mxu0
  %1041 = vmatprep.mubr.bf16.mxu0 0
  %1042 = vmatmul.mubr.bf16.gmra.mrb[0].mxu0 %v824
  %v1043 = vpop.f32.mrb[0].mxu0
  %v1044 = vadd.f32 %v847, %v1043
  %v1045 = vpop.f32.mrb[0].mxu0
  %v1046 = vpop.f32.mrb[0].mxu0
  %v1047 = vadd.f32 %v847, %v1046
  %v1048 = vpop.f32.mrb[0].mxu0
  %1049 = vmatprep.mubr.bf16.mxu0 0
  %1050 = vmatmul.mubr.bf16.gmra.mrb[0].mxu0 %v825
  %v1051 = vpop.f32.mrb[0].mxu0
  %v1052 = vadd.f32 %v847, %v1051
  %v1053 = vpop.f32.mrb[0].mxu0
  %v1054 = vpop.f32.mrb[0].mxu0
  %v1055 = vadd.f32 %v847, %v1054
  %v1056 = vpop.f32.mrb[0].mxu0
  %1057 = vdwg.mxu0
  %vm1058 = vcmp.gt.f32.partialorder %v932, 0.0
  %vm1059 = vcmp.gt.f32.partialorder %v935, 0.0
  %vm1060 = vcmp.gt.f32.partialorder %v940, 0.0
  %vm1061 = vcmp.gt.f32.partialorder %v943, 0.0
  %vm1062 = vcmp.gt.f32.partialorder %v948, 0.0
  %vm1063 = vcmp.gt.f32.partialorder %v951, 0.0
  %vm1064 = vcmp.gt.f32.partialorder %v956, 0.0
  %vm1065 = vcmp.gt.f32.partialorder %v959, 0.0
  %vm1066 = vcmp.gt.f32.partialorder %v964, 0.0
  %vm1067 = vcmp.gt.f32.partialorder %v967, 0.0
  %vm1068 = vcmp.gt.f32.partialorder %v972, 0.0
  %vm1069 = vcmp.gt.f32.partialorder %v975, 0.0
  %vm1070 = vcmp.gt.f32.partialorder %v980, 0.0
  %vm1071 = vcmp.gt.f32.partialorder %v983, 0.0
  %vm1072 = vcmp.gt.f32.partialorder %v988, 0.0
  %vm1073 = vcmp.gt.f32.partialorder %v991, 0.0
  %vm1074 = vcmp.gt.f32.partialorder %v996, 0.0
  %vm1075 = vcmp.gt.f32.partialorder %v999, 0.0
  %vm1076 = vcmp.gt.f32.partialorder %v1004, 0.0
  %vm1077 = vcmp.gt.f32.partialorder %v1007, 0.0
  %vm1078 = vcmp.gt.f32.partialorder %v1012, 0.0
  %vm1079 = vcmp.gt.f32.partialorder %v1015, 0.0
  %vm1080 = vcmp.gt.f32.partialorder %v1020, 0.0
  %vm1081 = vcmp.gt.f32.partialorder %v1023, 0.0
  %vm1082 = vcmp.gt.f32.partialorder %v1028, 0.0
  %vm1083 = vcmp.gt.f32.partialorder %v1031, 0.0
  %vm1084 = vcmp.gt.f32.partialorder %v1036, 0.0
  %vm1085 = vcmp.gt.f32.partialorder %v1039, 0.0
  %vm1086 = vcmp.gt.f32.partialorder %v1044, 0.0
  %vm1087 = vcmp.gt.f32.partialorder %v1047, 0.0
  %vm1088 = vcmp.gt.f32.partialorder %v1052, 0.0
  %vm1089 = vcmp.gt.f32.partialorder %v1055, 0.0
  %v1090 = vmul.f32 %v932, 0.01
  %v1091 = vmul.f32 %v935, 0.01
  %v1092 = vmul.f32 %v940, 0.01
  %v1093 = vmul.f32 %v943, 0.01
  %v1094 = vmul.f32 %v948, 0.01
  %v1095 = vmul.f32 %v951, 0.01
  %v1096 = vmul.f32 %v956, 0.01
  %v1097 = vmul.f32 %v959, 0.01
  %v1098 = vmul.f32 %v964, 0.01
  %v1099 = vmul.f32 %v967, 0.01
  %v1100 = vmul.f32 %v972, 0.01
  %v1101 = vmul.f32 %v975, 0.01
  %v1102 = vmul.f32 %v980, 0.01
  %v1103 = vmul.f32 %v983, 0.01
  %v1104 = vmul.f32 %v988, 0.01
  %v1105 = vmul.f32 %v991, 0.01
  %v1106 = vmul.f32 %v996, 0.01
  %v1107 = vmul.f32 %v999, 0.01
  %v1108 = vmul.f32 %v1004, 0.01
  %v1109 = vmul.f32 %v1007, 0.01
  %v1110 = vmul.f32 %v1012, 0.01
  %v1111 = vmul.f32 %v1015, 0.01
  %v1112 = vmul.f32 %v1020, 0.01
  %v1113 = vmul.f32 %v1023, 0.01
  %v1114 = vmul.f32 %v1028, 0.01
  %v1115 = vmul.f32 %v1031, 0.01
  %v1116 = vmul.f32 %v1036, 0.01
  %v1117 = vmul.f32 %v1039, 0.01
  %v1118 = vmul.f32 %v1044, 0.01
  %v1119 = vmul.f32 %v1047, 0.01
  %v1120 = vmul.f32 %v1052, 0.01
  %v1121 = vmul.f32 %v1055, 0.01
  %v1122 = vsel %vm1058, %v932, %v1090
  %v1123 = vsel %vm1059, %v935, %v1091
  %v1124 = vsel %vm1060, %v940, %v1092
  %v1125 = vsel %vm1061, %v943, %v1093
  %v1126 = vsel %vm1062, %v948, %v1094
  %v1127 = vsel %vm1063, %v951, %v1095
  %v1128 = vsel %vm1064, %v956, %v1096
  %v1129 = vsel %vm1065, %v959, %v1097
  %v1130 = vsel %vm1066, %v964, %v1098
  %v1131 = vsel %vm1067, %v967, %v1099
  %v1132 = vsel %vm1068, %v972, %v1100
  %v1133 = vsel %vm1069, %v975, %v1101
  %v1134 = vsel %vm1070, %v980, %v1102
  %v1135 = vsel %vm1071, %v983, %v1103
  %v1136 = vsel %vm1072, %v988, %v1104
  %v1137 = vsel %vm1073, %v991, %v1105
  %v1138 = vsel %vm1074, %v996, %v1106
  %v1139 = vsel %vm1075, %v999, %v1107
  %v1140 = vsel %vm1076, %v1004, %v1108
  %v1141 = vsel %vm1077, %v1007, %v1109
  %v1142 = vsel %vm1078, %v1012, %v1110
  %v1143 = vsel %vm1079, %v1015, %v1111
  %v1144 = vsel %vm1080, %v1020, %v1112
  %v1145 = vsel %vm1081, %v1023, %v1113
  %v1146 = vsel %vm1082, %v1028, %v1114
  %v1147 = vsel %vm1083, %v1031, %v1115
  %v1148 = vsel %vm1084, %v1036, %v1116
  %v1149 = vsel %vm1085, %v1039, %v1117
  %v1150 = vsel %vm1086, %v1044, %v1118
  %v1151 = vsel %vm1087, %v1047, %v1119
  %v1152 = vsel %vm1088, %v1052, %v1120
  %v1153 = vsel %vm1089, %v1055, %v1121
  %v1154 = vpack.c.bf16 %v1123, %v1122
  %v1155 = vpack.c.bf16 %v1125, %v1124
  %v1156 = vpack.c.bf16 %v1127, %v1126
  %v1157 = vpack.c.bf16 %v1129, %v1128
  %v1158 = vpack.c.bf16 %v1131, %v1130
  %v1159 = vpack.c.bf16 %v1133, %v1132
  %v1160 = vpack.c.bf16 %v1135, %v1134
  %v1161 = vpack.c.bf16 %v1137, %v1136
  %v1162 = vpack.c.bf16 %v1139, %v1138
  %v1163 = vpack.c.bf16 %v1141, %v1140
  %v1164 = vpack.c.bf16 %v1143, %v1142
  %v1165 = vpack.c.bf16 %v1145, %v1144
  %v1166 = vpack.c.bf16 %v1147, %v1146
  %v1167 = vpack.c.bf16 %v1149, %v1148
  %v1168 = vpack.c.bf16 %v1151, %v1150
  %v1169 = vpack.c.bf16 %v1153, %v1152
  %v1170 = vld [vmem:[%s7] sm:$0xf]
  %v1171 = vld [vmem:[%s7 + $0x4] sm:$0xf]
  %v1172 = vld [vmem:[%s7 + $0x8] sm:$0xf]
  %v1173 = vld [vmem:[%s7 + $0xc] sm:$0xf]
  %v1174 = vld [vmem:[%s7 + $0x10] sm:$0xf]
  %v1175 = vld [vmem:[%s7 + $0x14] sm:$0xf]
  %v1176 = vld [vmem:[%s7 + $0x18] sm:$0xf]
  %v1177 = vld [vmem:[%s7 + $0x1c] sm:$0xf]
  %v1178 = vld [vmem:[%s7 + $0x20] sm:$0xf]
  %v1179 = vld [vmem:[%s7 + $0x24] sm:$0xf]
  %v1180 = vld [vmem:[%s7 + $0x28] sm:$0xf]
  %v1181 = vld [vmem:[%s7 + $0x2c] sm:$0xf]
  %v1182 = vld [vmem:[%s7 + $0x30] sm:$0xf]
  %v1183 = vld [vmem:[%s7 + $0x34] sm:$0xf]
  %v1184 = vld [vmem:[%s7 + $0x38] sm:$0xf]
  %v1185 = vld [vmem:[%s7 + $0x3c] sm:$0xf]
  %v1186 = vld [vmem:[%s8] sm:$0x1]
  %v1188 = vlaneseq
  %v1189 = vshrl.u32 %v1188, 7
  %v1190 = vsub.s32 0, %v1189
  %v1191 = vrot.slane %v1186, %v1190
  %v1209 = vunpack.c.l.b16 %v1170
  %v1210 = vunpack.c.l.b16 %v1171
  %v1211 = vunpack.c.l.b16 %v1172
  %v1212 = vunpack.c.l.b16 %v1173
  %v1213 = vunpack.c.l.b16 %v1174
  %v1214 = vunpack.c.l.b16 %v1175
  %v1215 = vunpack.c.l.b16 %v1176
  %v1216 = vunpack.c.l.b16 %v1177
  %v1217 = vunpack.c.l.b16 %v1178
  %v1218 = vunpack.c.l.b16 %v1179
  %v1219 = vunpack.c.l.b16 %v1180
  %v1220 = vunpack.c.l.b16 %v1181
  %v1221 = vunpack.c.l.b16 %v1182
  %v1222 = vunpack.c.l.b16 %v1183
  %v1223 = vunpack.c.l.b16 %v1184
  %v1224 = vunpack.c.l.b16 %v1185
  %v1225 = vpack.c.b16 %v1210, %v1209
  %v1226 = vpack.c.b16 %v1212, %v1211
  %v1227 = vpack.c.b16 %v1214, %v1213
  %v1228 = vpack.c.b16 %v1216, %v1215
  %v1229 = vpack.c.b16 %v1218, %v1217
  %v1230 = vpack.c.b16 %v1220, %v1219
  %v1231 = vpack.c.b16 %v1222, %v1221
  %v1232 = vpack.c.b16 %v1224, %v1223
  %1241 = vmatprep.subr.bf16.mxu0 0
  %1242 = vmatpush1.bf16.msra.mxu0 %v1225
  %1243 = vmatprep.subr.bf16.mxu0 0
  %1244 = vmatpush1.bf16.msra.mxu0 %v1226
  %1245 = vmatprep.subr.bf16.mxu0 0
  %1246 = vmatpush1.bf16.msra.mxu0 %v1227
  %1247 = vmatprep.subr.bf16.mxu0 0
  %1248 = vmatpush1.bf16.msra.mxu0 %v1228
  %1249 = vmatprep.subr.bf16.mxu0 0
  %1250 = vmatpush1.bf16.msra.mxu0 %v1229
  %1251 = vmatprep.subr.bf16.mxu0 0
  %1252 = vmatpush1.bf16.msra.mxu0 %v1230
  %1253 = vmatprep.subr.bf16.mxu0 0
  %1254 = vmatpush1.bf16.msra.mxu0 %v1231
  %1255 = vmatprep.subr.bf16.mxu0 0
  %1256 = vmatpush1.bf16.msra.mxu0 %v1232
  %1257 = vmatprep.subr.bf16.mxu0 0
  %1258 = vmatpush1.bf16.msra.mxu0 0
  %1259 = vmatprep.subr.bf16.mxu0 0
  %1260 = vmatpush1.bf16.msra.mxu0 0
  %1261 = vmatprep.subr.bf16.mxu0 0
  %1262 = vmatpush1.bf16.msra.mxu0 0
  %1263 = vmatprep.subr.bf16.mxu0 0
  %1264 = vmatpush1.bf16.msra.mxu0 0
  %1265 = vmatprep.subr.bf16.mxu0 0
  %1266 = vmatpush1.bf16.msra.mxu0 0
  %1267 = vmatprep.subr.bf16.mxu0 0
  %1268 = vmatpush1.bf16.msra.mxu0 0
  %1269 = vmatprep.subr.bf16.mxu0 0
  %1270 = vmatpush1.bf16.msra.mxu0 0
  %1271 = vmatprep.subr.bf16.mxu0 0
  %1272 = vmatpush1.bf16.msra.mxu0 0
  %1273 = vmatprep.mubr.bf16.mxu0 0
  %1274 = vmatmul.mubr.bf16.gmra.mrb[0].mxu0 %v1154
  %v1275 = vpop.f32.mrb[0].mxu0
  %v1276 = vadd.f32 %v1191, %v1275
  %v1277 = vpop.f32.mrb[0].mxu0
  %v1278 = vpop.f32.mrb[0].mxu0
  %v1279 = vadd.f32 %v1191, %v1278
  %v1280 = vpop.f32.mrb[0].mxu0
  %1281 = vmatprep.mubr.bf16.mxu0 0
  %1282 = vmatmul.mubr.bf16.gmra.mrb[0].mxu0 %v1155
  %v1283 = vpop.f32.mrb[0].mxu0
  %v1284 = vadd.f32 %v1191, %v1283
  %v1285 = vpop.f32.mrb[0].mxu0
  %v1286 = vpop.f32.mrb[0].mxu0
  %v1287 = vadd.f32 %v1191, %v1286
  %v1288 = vpop.f32.mrb[0].mxu0
  %1289 = vmatprep.mubr.bf16.mxu0 0
  %1290 = vmatmul.mubr.bf16.gmra.mrb[0].mxu0 %v1156
  %v1291 = vpop.f32.mrb[0].mxu0
  %v1292 = vadd.f32 %v1191, %v1291
  %v1293 = vpop.f32.mrb[0].mxu0
  %v1294 = vpop.f32.mrb[0].mxu0
  %v1295 = vadd.f32 %v1191, %v1294
  %v1296 = vpop.f32.mrb[0].mxu0
  %1297 = vmatprep.mubr.bf16.mxu0 0
  %1298 = vmatmul.mubr.bf16.gmra.mrb[0].mxu0 %v1157
  %v1299 = vpop.f32.mrb[0].mxu0
  %v1300 = vadd.f32 %v1191, %v1299
  %v1301 = vpop.f32.mrb[0].mxu0
  %v1302 = vpop.f32.mrb[0].mxu0
  %v1303 = vadd.f32 %v1191, %v1302
  %v1304 = vpop.f32.mrb[0].mxu0
  %1305 = vmatprep.mubr.bf16.mxu0 0
  %1306 = vmatmul.mubr.bf16.gmra.mrb[0].mxu0 %v1158
  %v1307 = vpop.f32.mrb[0].mxu0
  %v1308 = vadd.f32 %v1191, %v1307
  %v1309 = vpop.f32.mrb[0].mxu0
  %v1310 = vpop.f32.mrb[0].mxu0
  %v1311 = vadd.f32 %v1191, %v1310
  %v1312 = vpop.f32.mrb[0].mxu0
  %1313 = vmatprep.mubr.bf16.mxu0 0
  %1314 = vmatmul.mubr.bf16.gmra.mrb[0].mxu0 %v1159
  %v1315 = vpop.f32.mrb[0].mxu0
  %v1316 = vadd.f32 %v1191, %v1315
  %v1317 = vpop.f32.mrb[0].mxu0
  %v1318 = vpop.f32.mrb[0].mxu0
  %v1319 = vadd.f32 %v1191, %v1318
  %v1320 = vpop.f32.mrb[0].mxu0
  %1321 = vmatprep.mubr.bf16.mxu0 0
  %1322 = vmatmul.mubr.bf16.gmra.mrb[0].mxu0 %v1160
  %v1323 = vpop.f32.mrb[0].mxu0
  %v1324 = vadd.f32 %v1191, %v1323
  %v1325 = vpop.f32.mrb[0].mxu0
  %v1326 = vpop.f32.mrb[0].mxu0
  %v1327 = vadd.f32 %v1191, %v1326
  %v1328 = vpop.f32.mrb[0].mxu0
  %1329 = vmatprep.mubr.bf16.mxu0 0
  %1330 = vmatmul.mubr.bf16.gmra.mrb[0].mxu0 %v1161
  %v1331 = vpop.f32.mrb[0].mxu0
  %v1332 = vadd.f32 %v1191, %v1331
  %v1333 = vpop.f32.mrb[0].mxu0
  %v1334 = vpop.f32.mrb[0].mxu0
  %v1335 = vadd.f32 %v1191, %v1334
  %v1336 = vpop.f32.mrb[0].mxu0
  %1337 = vmatprep.mubr.bf16.mxu0 0
  %1338 = vmatmul.mubr.bf16.gmra.mrb[0].mxu0 %v1162
  %v1339 = vpop.f32.mrb[0].mxu0
  %v1340 = vadd.f32 %v1191, %v1339
  %v1341 = vpop.f32.mrb[0].mxu0
  %v1342 = vpop.f32.mrb[0].mxu0
  %v1343 = vadd.f32 %v1191, %v1342
  %v1344 = vpop.f32.mrb[0].mxu0
  %1345 = vmatprep.mubr.bf16.mxu0 0
  %1346 = vmatmul.mubr.bf16.gmra.mrb[0].mxu0 %v1163
  %v1347 = vpop.f32.mrb[0].mxu0
  %v1348 = vadd.f32 %v1191, %v1347
  %v1349 = vpop.f32.mrb[0].mxu0
  %v1350 = vpop.f32.mrb[0].mxu0
  %v1351 = vadd.f32 %v1191, %v1350
  %v1352 = vpop.f32.mrb[0].mxu0
  %1353 = vmatprep.mubr.bf16.mxu0 0
  %1354 = vmatmul.mubr.bf16.gmra.mrb[0].mxu0 %v1164
  %v1355 = vpop.f32.mrb[0].mxu0
  %v1356 = vadd.f32 %v1191, %v1355
  %v1357 = vpop.f32.mrb[0].mxu0
  %v1358 = vpop.f32.mrb[0].mxu0
  %v1359 = vadd.f32 %v1191, %v1358
  %v1360 = vpop.f32.mrb[0].mxu0
  %1361 = vmatprep.mubr.bf16.mxu0 0
  %1362 = vmatmul.mubr.bf16.gmra.mrb[0].mxu0 %v1165
  %v1363 = vpop.f32.mrb[0].mxu0
  %v1364 = vadd.f32 %v1191, %v1363
  %v1365 = vpop.f32.mrb[0].mxu0
  %v1366 = vpop.f32.mrb[0].mxu0
  %v1367 = vadd.f32 %v1191, %v1366
  %v1368 = vpop.f32.mrb[0].mxu0
  %1369 = vmatprep.mubr.bf16.mxu0 0
  %1370 = vmatmul.mubr.bf16.gmra.mrb[0].mxu0 %v1166
  %v1371 = vpop.f32.mrb[0].mxu0
  %v1372 = vadd.f32 %v1191, %v1371
  %v1373 = vpop.f32.mrb[0].mxu0
  %v1374 = vpop.f32.mrb[0].mxu0
  %v1375 = vadd.f32 %v1191, %v1374
  %v1376 = vpop.f32.mrb[0].mxu0
  %1377 = vmatprep.mubr.bf16.mxu0 0
  %1378 = vmatmul.mubr.bf16.gmra.mrb[0].mxu0 %v1167
  %v1379 = vpop.f32.mrb[0].mxu0
  %v1380 = vadd.f32 %v1191, %v1379
  %v1381 = vpop.f32.mrb[0].mxu0
  %v1382 = vpop.f32.mrb[0].mxu0
  %v1383 = vadd.f32 %v1191, %v1382
  %v1384 = vpop.f32.mrb[0].mxu0
  %1385 = vmatprep.mubr.bf16.mxu0 0
  %1386 = vmatmul.mubr.bf16.gmra.mrb[0].mxu0 %v1168
  %v1387 = vpop.f32.mrb[0].mxu0
  %v1388 = vadd.f32 %v1191, %v1387
  %v1389 = vpop.f32.mrb[0].mxu0
  %v1390 = vpop.f32.mrb[0].mxu0
  %v1391 = vadd.f32 %v1191, %v1390
  %v1392 = vpop.f32.mrb[0].mxu0
  %1393 = vmatprep.mubr.bf16.mxu0 0
  %1394 = vmatmul.mubr.bf16.gmra.mrb[0].mxu0 %v1169
  %v1395 = vpop.f32.mrb[0].mxu0
  %v1396 = vadd.f32 %v1191, %v1395
  %v1397 = vpop.f32.mrb[0].mxu0
  %v1398 = vpop.f32.mrb[0].mxu0
  %v1399 = vadd.f32 %v1191, %v1398
  %v1400 = vpop.f32.mrb[0].mxu0
  %1401 = vdwg.mxu0
  %v1402 = vtanh.pop %v1276
  %v1403 = vtanh.pop %v1279
  %v1404 = vtanh.pop %v1284
  %v1405 = vtanh.pop %v1287
  %v1406 = vtanh.pop %v1292
  %v1407 = vtanh.pop %v1295
  %v1408 = vtanh.pop %v1300
  %v1409 = vtanh.pop %v1303
  %v1410 = vtanh.pop %v1308
  %v1411 = vtanh.pop %v1311
  %v1412 = vtanh.pop %v1316
  %v1413 = vtanh.pop %v1319
  %v1414 = vtanh.pop %v1324
  %v1415 = vtanh.pop %v1327
  %v1416 = vtanh.pop %v1332
  %v1417 = vtanh.pop %v1335
  %v1418 = vtanh.pop %v1340
  %v1419 = vtanh.pop %v1343
  %v1420 = vtanh.pop %v1348
  %v1421 = vtanh.pop %v1351
  %v1422 = vtanh.pop %v1356
  %v1423 = vtanh.pop %v1359
  %v1424 = vtanh.pop %v1364
  %v1425 = vtanh.pop %v1367
  %v1426 = vtanh.pop %v1372
  %v1427 = vtanh.pop %v1375
  %v1428 = vtanh.pop %v1380
  %v1429 = vtanh.pop %v1383
  %v1430 = vtanh.pop %v1388
  %v1431 = vtanh.pop %v1391
  %v1432 = vtanh.pop %v1396
  %v1433 = vtanh.pop %v1399
  %vm1434 = vcmask 64512
  %1435 = vst.msk [vmem:[%s9] sm:$0xff] %vm1434, %v1402
  %1436 = vst.msk [vmem:[%s9 + $0x8] sm:$0xff] %vm1434, %v1403
  %1437 = vst.msk [vmem:[%s9 + $0x10] sm:$0xff] %vm1434, %v1404
  %1438 = vst.msk [vmem:[%s9 + $0x18] sm:$0xff] %vm1434, %v1405
  %1439 = vst.msk [vmem:[%s9 + $0x20] sm:$0xff] %vm1434, %v1406
  %1440 = vst.msk [vmem:[%s9 + $0x28] sm:$0xff] %vm1434, %v1407
  %1441 = vst.msk [vmem:[%s9 + $0x30] sm:$0xff] %vm1434, %v1408
  %1442 = vst.msk [vmem:[%s9 + $0x38] sm:$0xff] %vm1434, %v1409
  %1443 = vst.msk [vmem:[%s9 + $0x40] sm:$0xff] %vm1434, %v1410
  %1444 = vst.msk [vmem:[%s9 + $0x48] sm:$0xff] %vm1434, %v1411
  %1445 = vst.msk [vmem:[%s9 + $0x50] sm:$0xff] %vm1434, %v1412
  %1446 = vst.msk [vmem:[%s9 + $0x58] sm:$0xff] %vm1434, %v1413
  %1447 = vst.msk [vmem:[%s9 + $0x60] sm:$0xff] %vm1434, %v1414
  %1448 = vst.msk [vmem:[%s9 + $0x68] sm:$0xff] %vm1434, %v1415
  %1449 = vst.msk [vmem:[%s9 + $0x70] sm:$0xff] %vm1434, %v1416
  %1450 = vst.msk [vmem:[%s9 + $0x78] sm:$0xff] %vm1434, %v1417
  %1451 = vst.msk [vmem:[%s9 + $0x80] sm:$0xff] %vm1434, %v1418
  %1452 = vst.msk [vmem:[%s9 + $0x88] sm:$0xff] %vm1434, %v1419
  %1453 = vst.msk [vmem:[%s9 + $0x90] sm:$0xff] %vm1434, %v1420
  %1454 = vst.msk [vmem:[%s9 + $0x98] sm:$0xff] %vm1434, %v1421
  %1455 = vst.msk [vmem:[%s9 + $0xa0] sm:$0xff] %vm1434, %v1422
  %1456 = vst.msk [vmem:[%s9 + $0xa8] sm:$0xff] %vm1434, %v1423
  %1457 = vst.msk [vmem:[%s9 + $0xb0] sm:$0xff] %vm1434, %v1424
  %1458 = vst.msk [vmem:[%s9 + $0xb8] sm:$0xff] %vm1434, %v1425
  %1459 = vst.msk [vmem:[%s9 + $0xc0] sm:$0xff] %vm1434, %v1426
  %1460 = vst.msk [vmem:[%s9 + $0xc8] sm:$0xff] %vm1434, %v1427
  %1461 = vst.msk [vmem:[%s9 + $0xd0] sm:$0xff] %vm1434, %v1428
  %1462 = vst.msk [vmem:[%s9 + $0xd8] sm:$0xff] %vm1434, %v1429
  %1463 = vst.msk [vmem:[%s9 + $0xe0] sm:$0xff] %vm1434, %v1430
  %1464 = vst.msk [vmem:[%s9 + $0xe8] sm:$0xff] %vm1434, %v1431
  %1465 = vst.msk [vmem:[%s9 + $0xf0] sm:$0xff] %vm1434, %v1432
  %1466 = vst.msk [vmem:[%s9 + $0xf8] sm:$0xff] %vm1434, %v1433
  // Predicated region
  $region38: #{tpu_custom_call.1} parent=0 // pred_check
    _
  $region39: #{tpu_custom_call.1} parent=0 // pred_check_branch
    %1468 = sbr.rel (0) target = $region41
  $region40: #{tpu_custom_call.1} parent=0 // pred_region
    _
  $region41: #{tpu_custom_call.1} parent=0 // pred_fallthru
    _
  // Predicated region
  $region42: #{tpu_custom_call.1} parent=0 // pred_check
    _
  $region43: #{tpu_custom_call.1} parent=0 // pred_check_branch
    %1470 = sbr.rel (0) target = $region45
  $region44: #{tpu_custom_call.1} parent=0 // pred_region
    _
  $region45: #{tpu_custom_call.1} parent=0 // pred_fallthru
    _

</llo_original>
